<compile_context>
chip_gen: v5e
topology: v5e:2x2
jax: 0.10.0
libtpu: 0.0.40
codegen_flags: <defaults>
</compile_context>

<pallas_src>
import functools
import math

import jax
import jax.numpy as jnp
from jax import lax
from jax.experimental import pallas as pl
from jax.experimental.pallas import tpu as pltpu


def encoder_layer_kernel(
    x_ref,
    wq_ref, bq_ref, wk_ref, bk_ref, wv_ref, bv_ref, wo_ref, bo_ref,
    g1_ref, be1_ref,
    w1_ref, b1_ref, w2_ref, b2_ref,
    g2_ref, be2_ref,
    o_ref,
    *, num_heads, eps,
):
    f32 = jnp.float32
    bf16 = jnp.bfloat16

    x = x_ref[...].astype(f32)            # (S, D) f32 for residual / LN math
    S, D = x.shape
    xb = x.astype(bf16)                   # bf16 MXU operand

    # --- multi-head self attention --------------------------------------
    # 1/sqrt(dk) is already folded into Wq / bq (wrapper).
    # wq/wk/wv: (H, D, dk); wo: (H, dk, D).  Heads are selected by a leading-
    # axis (sublane-major) weight index — no lane slicing of activations, no
    # materialized transpose.  fori_loop bounds per-head live ranges; the Wo
    # projection is accumulated into the carry (MXU accumulate, no concat).
    attn0 = jnp.broadcast_to(bo_ref[...].astype(f32), (S, D))

    def head_body(h, attn):
        qh = (jnp.dot(xb, wq_ref[h], preferred_element_type=f32)
              + bq_ref[h]).astype(bf16)                       # (S, dk)
        kh = (jnp.dot(xb, wk_ref[h], preferred_element_type=f32)
              + bk_ref[h]).astype(bf16)
        vh = (jnp.dot(xb, wv_ref[h], preferred_element_type=f32)
              + bv_ref[h]).astype(bf16)
        # Scores: contract last dims directly (q @ k^T without an XLU transpose).
        s = lax.dot_general(qh, kh, (((1,), (1,)), ((), ())),
                            preferred_element_type=f32)       # (S, S) f32
        s = s - jnp.max(s, axis=-1, keepdims=True)
        # TODO(synk): on v6e/v7x the exp could run in bf16 (bf16 EUP); kept f32
        #             so the same kernel is numerically safe on v5e.
        p = jnp.exp(s)
        p = p * pl.reciprocal(jnp.sum(p, axis=-1, keepdims=True), approx=True)
        head = jnp.dot(p.astype(bf16), vh, preferred_element_type=f32)   # (S, dk)
        return attn + jnp.dot(head.astype(bf16), wo_ref[h],
                              preferred_element_type=f32)

    attn = lax.fori_loop(0, num_heads, head_body, attn0)

    def layer_norm(y, g_ref, b_ref):      # f32 VPU path
        mu = jnp.mean(y, axis=-1, keepdims=True)
        yc = y - mu
        var = jnp.mean(yc * yc, axis=-1, keepdims=True)
        return yc * lax.rsqrt(var + eps) * g_ref[...] + b_ref[...]

    h1 = layer_norm(x + attn, g1_ref, be1_ref)

    # --- position-wise feed forward --------------------------------------
    # TODO(synk): tile over d_ff for realistic F so intermediates fit VMEM.
    ff = jnp.dot(h1.astype(bf16), w1_ref[...], preferred_element_type=f32) + b1_ref[...]
    ff = jnp.maximum(ff, 0.0)
    ff = jnp.dot(ff.astype(bf16), w2_ref[...], preferred_element_type=f32) + b2_ref[...]

    o_ref[...] = layer_norm(h1 + ff, g2_ref, be2_ref).astype(o_ref.dtype)


@functools.lru_cache(maxsize=None)
def _single_buffer_supported():
    """One-time probe: does pipeline_mode=pl.Buffered(1) lower on this jax/libtpu?

    If not, grid-invariant blocks fall back to the default double-buffered
    BlockSpec and the VMEM budget accounts for 2x weight buffers.
    """
    try:
        def k(w_ref, x_ref, o_ref):
            o_ref[...] = x_ref[...] + w_ref[...]

        f = pl.pallas_call(
            k,
            out_shape=jax.ShapeDtypeStruct((2, 8, 128), jnp.float32),
            grid=(2,),
            in_specs=[
                pl.BlockSpec((8, 128), lambda i: (0, 0),
                             pipeline_mode=pl.Buffered(1)),
                pl.BlockSpec((None, 8, 128), lambda i: (i, 0, 0)),
            ],
            out_specs=pl.BlockSpec((None, 8, 128), lambda i: (i, 0, 0)),
        )
        jax.block_until_ready(f(jnp.zeros((8, 128), jnp.float32),
                                jnp.zeros((2, 8, 128), jnp.float32)))
        return True
    except Exception:
        return False


def _const_spec(shape, single_buffered):
    """Whole-array block, identical for every grid step (grid-invariant)."""
    index_map = lambda b, _n=len(shape): (0,) * _n
    if single_buffered:
        return pl.BlockSpec(shape, index_map, pipeline_mode=pl.Buffered(1))
    return pl.BlockSpec(shape, index_map)


def _vmem_cap_bytes():
    # ~3/4 of physical VMEM: ≈96 MiB on v5e/v6e (128 MiB), ≈48 MiB on v7x (64 MiB).
    try:
        cap = int(pltpu.get_tpu_info().vmem_capacity_bytes)
        if cap > 0:
            return (3 * cap) // 4
    except Exception:
        pass
    return 64 * 2 ** 20


def prepare_params(params, *, num_heads):
    """Call ONCE and cache: folds 1/sqrt(dk) into Wq/bq, casts matmul weights to
    bf16, and pre-splits Wq/Wk/Wv/Wo per head so the kernel never lane-slices
    activations."""
    D = params["wq"].shape[0]
    dk = D // num_heads
    assert dk * num_heads == D, "d_model must be divisible by num_heads"
    scale = 1.0 / math.sqrt(dk)
    bf16, f32 = jnp.bfloat16, jnp.float32

    def split_w(w):   # (D, D) -> (H, D, dk); head h is W[:, h*dk:(h+1)*dk]
        return jnp.transpose(w.reshape(D, num_heads, dk), (1, 0, 2))

    def split_b(b):   # (1, D) -> (H, 1, dk)
        return jnp.transpose(b.reshape(1, num_heads, dk), (1, 0, 2))

    return {
        "wq": (split_w(params["wq"]) * scale).astype(bf16),
        "bq": (split_b(params["bq"]) * scale).astype(f32),     # scale folds into bq too
        "wk": split_w(params["wk"]).astype(bf16),
        "bk": split_b(params["bk"]).astype(f32),
        "wv": split_w(params["wv"]).astype(bf16),
        "bv": split_b(params["bv"]).astype(f32),
        "wo": params["wo"].reshape(num_heads, dk, D).astype(bf16),  # rows per head
        "bo": params["bo"].astype(f32),
        "g1": params["g1"].astype(f32), "be1": params["be1"].astype(f32),
        "w1": params["w1"].astype(bf16), "b1": params["b1"].astype(f32),
        "w2": params["w2"].astype(bf16), "b2": params["b2"].astype(f32),
        "g2": params["g2"].astype(f32), "be2": params["be2"].astype(f32),
    }


def encoder_layer(x, prep, *, num_heads, eps=1e-5, mask=None,
                  out_dtype=jnp.bfloat16):
    if mask is not None:
        # TODO(synk): optional attention mask not implemented (mask=None only).
        raise NotImplementedError("attention mask is not supported by this kernel")
    # Dropout is identity (inference / eval mode).

    B, S, D = x.shape
    H, _, dk = prep["wq"].shape
    assert H == num_heads and H * dk == D
    F = prep["w1"].shape[1]

    single_buf = _single_buffer_supported()
    wbuf = 1 if single_buf else 2
    cs = lambda shape: _const_spec(shape, single_buf)

    in_specs = [
        pl.BlockSpec((None, S, D), lambda b: (b, 0, 0)),         # x
        cs((H, D, dk)), cs((H, 1, dk)),                          # wq, bq
        cs((H, D, dk)), cs((H, 1, dk)),                          # wk, bk
        cs((H, D, dk)), cs((H, 1, dk)),                          # wv, bv
        cs((H, dk, D)), cs((1, D)),                              # wo, bo
        cs((1, D)), cs((1, D)),                                  # gamma1, beta1
        cs((D, F)), cs((1, F)),                                  # w1, b1
        cs((F, D)), cs((1, D)),                                  # w2, b2
        cs((1, D)), cs((1, D)),                                  # gamma2, beta2
    ]
    out_specs = pl.BlockSpec((None, S, D), lambda b: (b, 0, 0))

    # VMEM budget: bf16 weights (x wbuf buffers) + f32 small params + double-
    # buffered x/out blocks + in-kernel f32 intermediates, 2x headroom, clamped
    # to ~3/4 of physical VMEM.
    weight_bytes = (4 * D * D + 2 * D * F) * 2 * wbuf
    small_bytes = (9 * D + F) * 4 * wbuf
    io_bytes = 2 * S * D * (x.dtype.itemsize + jnp.dtype(out_dtype).itemsize)
    live_bytes = (3 * S * D + S * F + 2 * S * S) * 4
    need = 2 * (weight_bytes + small_bytes + io_bytes + live_bytes)
    vmem_limit = int(min(_vmem_cap_bytes(), max(need, 16 * 2 ** 20)))

    kern = functools.partial(encoder_layer_kernel, num_heads=num_heads, eps=eps)

    # TODO(synk): add a second "parallel" grid axis (S query tiles, flash-style
    #             online softmax) so both v7x TensorCores stay busy at small B.
    return pl.pallas_call(
        kern,
        out_shape=jax.ShapeDtypeStruct((B, S, D), out_dtype),
        grid_spec=pltpu.PrefetchScalarGridSpec(
            num_scalar_prefetch=0,
            grid=(B,),
            in_specs=in_specs,
            out_specs=out_specs,
        ),
        compiler_params=pltpu.CompilerParams(
            dimension_semantics=("parallel",),
            vmem_limit_bytes=vmem_limit,
        ),
    )(
        x,
        prep["wq"], prep["bq"], prep["wk"], prep["bk"],
        prep["wv"], prep["bv"], prep["wo"], prep["bo"],
        prep["g1"], prep["be1"],
        prep["w1"], prep["b1"], prep["w2"], prep["b2"],
        prep["g2"], prep["be2"],
    )


def encoder_layer_ref(x, p, *, num_heads, eps=1e-5):
    """Pure-JAX f32 reference for correctness check."""
    B, S, D = x.shape
    dk = D // num_heads
    q = x @ p["wq"] + p["bq"]
    k = x @ p["wk"] + p["bk"]
    v = x @ p["wv"] + p["bv"]

    def split(t):  # (B, S, D) -> (B, H, S, dk)
        return t.reshape(B, S, num_heads, dk).transpose(0, 2, 1, 3)

    qh, kh, vh = split(q), split(k), split(v)
    s = jnp.einsum("bhqd,bhkd->bhqk", qh, kh) / (dk ** 0.5)
    a = jax.nn.softmax(s, axis=-1)
    o = jnp.einsum("bhqk,bhkd->bhqd", a, vh).transpose(0, 2, 1, 3).reshape(B, S, D)
    attn = o @ p["wo"] + p["bo"]

    def ln(y, g, b):
        mu = y.mean(-1, keepdims=True)
        var = ((y - mu) ** 2).mean(-1, keepdims=True)
        return (y - mu) / jnp.sqrt(var + eps) * g + b

    h1 = ln(x + attn, p["g1"], p["be1"])
    ff = jnp.maximum(h1 @ p["w1"] + p["b1"], 0.0) @ p["w2"] + p["b2"]
    return ln(h1 + ff, p["g2"], p["be2"])


def init_params(key, d_model, d_ff):
    ks = jax.random.split(key, 8)
    std = 0.05
    f32 = jnp.float32
    return {
        "wq": jax.random.normal(ks[0], (d_model, d_model), f32) * std,
        "bq": jax.random.normal(ks[1], (1, d_model), f32) * std,
        "wk": jax.random.normal(ks[2], (d_model, d_model), f32) * std,
        "bk": jnp.zeros((1, d_model), f32),
        "wv": jax.random.normal(ks[3], (d_model, d_model), f32) * std,
        "bv": jnp.zeros((1, d_model), f32),
        "wo": jax.random.normal(ks[4], (d_model, d_model), f32) * std,
        "bo": jnp.zeros((1, d_model), f32),
        "g1": jnp.ones((1, d_model), f32),
        "be1": jnp.zeros((1, d_model), f32),
        "w1": jax.random.normal(ks[5], (d_model, d_ff), f32) * std,
        "b1": jax.random.normal(ks[6], (1, d_ff), f32) * std,
        "w2": jax.random.normal(ks[7], (d_ff, d_model), f32) * std,
        "b2": jnp.zeros((1, d_model), f32),
        "g2": jnp.ones((1, d_model), f32),
        "be2": jnp.zeros((1, d_model), f32),
    }


if __name__ == "__main__":
    B, S, d_model, num_heads, d_ff = 2, 8, 32, 4, 64

    key = jax.random.PRNGKey(0)
    kx, kp = jax.random.split(key)
    x = jax.random.normal(kx, (B, S, d_model), jnp.float32)
    params = init_params(kp, d_model, d_ff)

    # Pre-cast / pre-split weights ONCE (bf16 + scale fold), then run the kernel.
    prep = prepare_params(params, num_heads=num_heads)
    out = encoder_layer(x, prep, num_heads=num_heads)
    out = jax.block_until_ready(out)

    ref = encoder_layer_ref(x, params, num_heads=num_heads)
    assert out.shape == (B, S, d_model)
    out_f32 = out.astype(jnp.float32)
    err = jnp.max(jnp.abs(out_f32 - ref))
    assert jnp.allclose(out_f32, ref, atol=3e-2, rtol=3e-2), f"max abs err = {err}"
    print("KERNEL_OK")
</pallas_src>

<mosaic_0001>
module attributes {stable_mosaic.version = 11 : i64} {
  func.func @k(%arg0: i32, %arg1: memref<8x128xf32, #tpu.memory_space<vmem>>, %arg2: memref<1x8x128xf32, #tpu.memory_space<vmem>>, %arg3: memref<1x8x128xf32, #tpu.memory_space<vmem>>) attributes {dimension_semantics = [#tpu.dimension_semantics<arbitrary>], iteration_bounds = array<i64: 2>, scalar_prefetch = 0 : i64, scratch_operands = 0 : i64, tpu.core_type = #tpu.core_type<tc>, window_params = [{pipeline_mode = #tpu.pipeline_mode<synchronous>, transform_indices = @transform_0, window_bounds = array<i64: 8, 128>}, {transform_indices = @transform_1, window_bounds = array<i64: 1, 8, 128>}, {transform_indices = @transform_2, window_bounds = array<i64: 1, 8, 128>}]} {
    %c0 = arith.constant 0 : index
    %c0_0 = arith.constant 0 : index
    %c0_1 = arith.constant 0 : index
    %0 = vector.load %arg2[%c0, %c0_0, %c0_1] : memref<1x8x128xf32, #tpu.memory_space<vmem>>, vector<1x8x128xf32>
    %1 = vector.shape_cast %0 : vector<1x8x128xf32> to vector<8x128xf32>
    %c0_2 = arith.constant 0 : index
    %c0_3 = arith.constant 0 : index
    %2 = vector.load %arg1[%c0_2, %c0_3] : memref<8x128xf32, #tpu.memory_space<vmem>>, vector<8x128xf32>
    %3 = arith.addf %1, %2 : vector<8x128xf32>
    %c0_4 = arith.constant 0 : index
    %c0_5 = arith.constant 0 : index
    %c0_6 = arith.constant 0 : index
    %4 = vector.load %arg3[%c0_4, %c0_5, %c0_6] : memref<1x8x128xf32, #tpu.memory_space<vmem>>, vector<1x8x128xf32>
    %5 = vector.shape_cast %4 : vector<1x8x128xf32> to vector<8x128xf32>
    %6 = vector.shape_cast %3 : vector<8x128xf32> to vector<1x8x128xf32>
    tpu.vector_store %arg3[%c0_4, %c0_5, %c0_6], %6 {strides = array<i32>} : memref<1x8x128xf32, #tpu.memory_space<vmem>>, vector<1x8x128xf32>,
    return
  }
  func.func @transform_0(%arg0: i32) -> (i32, i32) {
    %c0_i32 = arith.constant 0 : i32
    %c0_i32_0 = arith.constant 0 : i32
    %c0_i32_1 = arith.constant 0 : i32
    return %c0_i32, %c0_i32_0 : i32, i32
  }
  func.func @transform_1(%arg0: i32) -> (i32, i32, i32) {
    %c0_i32 = arith.constant 0 : i32
    %c0_i32_0 = arith.constant 0 : i32
    %c0_i32_1 = arith.constant 0 : i32
    return %arg0, %c0_i32, %c0_i32_0 : i32, i32, i32
  }
  func.func @transform_2(%arg0: i32) -> (i32, i32, i32) {
    %c0_i32 = arith.constant 0 : i32
    %c0_i32_0 = arith.constant 0 : i32
    %c0_i32_1 = arith.constant 0 : i32
    return %arg0, %c0_i32, %c0_i32_0 : i32, i32, i32
  }
}

module attributes {stable_mosaic.version = 11 : i64} {
  func.func @encoder_layer_kernel(%arg0: i32, %arg1: memref<1x8x32xf32, #tpu.memory_space<vmem>>, %arg2: memref<4x32x8xbf16, #tpu.memory_space<vmem>>, %arg3: memref<4x1x8xf32, #tpu.memory_space<vmem>>, %arg4: memref<4x32x8xbf16, #tpu.memory_space<vmem>>, %arg5: memref<4x1x8xf32, #tpu.memory_space<vmem>>, %arg6: memref<4x32x8xbf16, #tpu.memory_space<vmem>>, %arg7: memref<4x1x8xf32, #tpu.memory_space<vmem>>, %arg8: memref<4x8x32xbf16, #tpu.memory_space<vmem>>, %arg9: memref<1x32xf32, #tpu.memory_space<vmem>>, %arg10: memref<1x32xf32, #tpu.memory_space<vmem>>, %arg11: memref<1x32xf32, #tpu.memory_space<vmem>>, %arg12: memref<32x64xbf16, #tpu.memory_space<vmem>>, %arg13: memref<1x64xf32, #tpu.memory_space<vmem>>, %arg14: memref<64x32xbf16, #tpu.memory_space<vmem>>, %arg15: memref<1x32xf32, #tpu.memory_space<vmem>>, %arg16: memref<1x32xf32, #tpu.memory_space<vmem>>, %arg17: memref<1x32xf32, #tpu.memory_space<vmem>>, %arg18: memref<1x8x32xbf16, #tpu.memory_space<vmem>>) attributes {dimension_semantics = [#tpu.dimension_semantics<parallel>], iteration_bounds = array<i64: 2>, scalar_prefetch = 0 : i64, scratch_operands = 0 : i64, tpu.core_type = #tpu.core_type<tc>, window_params = [{transform_indices = @transform_0, window_bounds = array<i64: 1, 8, 32>}, {pipeline_mode = #tpu.pipeline_mode<synchronous>, transform_indices = @transform_1, window_bounds = array<i64: 4, 32, 8>}, {pipeline_mode = #tpu.pipeline_mode<synchronous>, transform_indices = @transform_2, window_bounds = array<i64: 4, 1, 8>}, {pipeline_mode = #tpu.pipeline_mode<synchronous>, transform_indices = @transform_3, window_bounds = array<i64: 4, 32, 8>}, {pipeline_mode = #tpu.pipeline_mode<synchronous>, transform_indices = @transform_4, window_bounds = array<i64: 4, 1, 8>}, {pipeline_mode = #tpu.pipeline_mode<synchronous>, transform_indices = @transform_5, window_bounds = array<i64: 4, 32, 8>}, {pipeline_mode = #tpu.pipeline_mode<synchronous>, transform_indices = @transform_6, window_bounds = array<i64: 4, 1, 8>}, {pipeline_mode = #tpu.pipeline_mode<synchronous>, transform_indices = @transform_7, window_bounds = array<i64: 4, 8, 32>}, {pipeline_mode = #tpu.pipeline_mode<synchronous>, transform_indices = @transform_8, window_bounds = array<i64: 1, 32>}, {pipeline_mode = #tpu.pipeline_mode<synchronous>, transform_indices = @transform_9, window_bounds = array<i64: 1, 32>}, {pipeline_mode = #tpu.pipeline_mode<synchronous>, transform_indices = @transform_10, window_bounds = array<i64: 1, 32>}, {pipeline_mode = #tpu.pipeline_mode<synchronous>, transform_indices = @transform_11, window_bounds = array<i64: 32, 64>}, {pipeline_mode = #tpu.pipeline_mode<synchronous>, transform_indices = @transform_12, window_bounds = array<i64: 1, 64>}, {pipeline_mode = #tpu.pipeline_mode<synchronous>, transform_indices = @transform_13, window_bounds = array<i64: 64, 32>}, {pipeline_mode = #tpu.pipeline_mode<synchronous>, transform_indices = @transform_14, window_bounds = array<i64: 1, 32>}, {pipeline_mode = #tpu.pipeline_mode<synchronous>, transform_indices = @transform_15, window_bounds = array<i64: 1, 32>}, {pipeline_mode = #tpu.pipeline_mode<synchronous>, transform_indices = @transform_16, window_bounds = array<i64: 1, 32>}, {transform_indices = @transform_17, window_bounds = array<i64: 1, 8, 32>}]} {
    %c0 = arith.constant 0 : index
    %c0_0 = arith.constant 0 : index
    %c0_1 = arith.constant 0 : index
    %0 = vector.load %arg1[%c0, %c0_0, %c0_1] : memref<1x8x32xf32, #tpu.memory_space<vmem>>, vector<1x8x32xf32>
    %1 = vector.shape_cast %0 : vector<1x8x32xf32> to vector<8x32xf32>
    %2 = arith.truncf %1 : vector<8x32xf32> to vector<8x32xbf16>
    %c0_2 = arith.constant 0 : index
    %c0_3 = arith.constant 0 : index
    %3 = vector.load %arg9[%c0_2, %c0_3] : memref<1x32xf32, #tpu.memory_space<vmem>>, vector<1x32xf32>
    %4 = vector.shape_cast %3 : vector<1x32xf32> to vector<1x32xf32>
    %5 = vector.broadcast %4 : vector<1x32xf32> to vector<8x32xf32>
    %c0_i32 = arith.constant 0 : i32
    %c4_i32 = arith.constant 4 : i32
    %6 = arith.addi %c0_i32, %c4_i32 : i32
    %c1_i32 = arith.constant 1 : i32
    %7 = scf.for %arg19 = %c0_i32 to %6 step %c1_i32 iter_args(%arg20 = %5) -> (vector<8x32xf32>)  : i32 {
      %72 = arith.index_cast %arg19 : i32 to index
      %c0_36 = arith.constant 0 : index
      %c0_37 = arith.constant 0 : index
      %73 = vector.load %arg2[%72, %c0_36, %c0_37] : memref<4x32x8xbf16, #tpu.memory_space<vmem>>, vector<1x32x8xbf16>
      %74 = vector.shape_cast %73 : vector<1x32x8xbf16> to vector<32x8xbf16>
      %cst_38 = arith.constant dense<0.000000e+00> : vector<8x8xf32>
      %75 = tpu.matmul %2, %74, %cst_38 {dimension_numbers = #tpu.dot_dimension_numbers<[1], [0], [0], [1], [0, 0, 1, 1], [], []>} : vector<8x32xbf16>, vector<32x8xbf16>, vector<8x8xf32> -> vector<8x8xf32>
      %76 = arith.index_cast %arg19 : i32 to index
      %c0_39 = arith.constant 0 : index
      %c0_40 = arith.constant 0 : index
      %77 = vector.load %arg3[%76, %c0_39, %c0_40] : memref<4x1x8xf32, #tpu.memory_space<vmem>>, vector<1x1x8xf32>
      %78 = vector.shape_cast %77 : vector<1x1x8xf32> to vector<1x8xf32>
      %79 = vector.broadcast %78 : vector<1x8xf32> to vector<8x8xf32>
      %80 = arith.addf %75, %79 : vector<8x8xf32>
      %81 = arith.truncf %80 : vector<8x8xf32> to vector<8x8xbf16>
      %82 = arith.index_cast %arg19 : i32 to index
      %c0_41 = arith.constant 0 : index
      %c0_42 = arith.constant 0 : index
      %83 = vector.load %arg4[%82, %c0_41, %c0_42] : memref<4x32x8xbf16, #tpu.memory_space<vmem>>, vector<1x32x8xbf16>
      %84 = vector.shape_cast %83 : vector<1x32x8xbf16> to vector<32x8xbf16>
      %cst_43 = arith.constant dense<0.000000e+00> : vector<8x8xf32>
      %85 = tpu.matmul %2, %84, %cst_43 {dimension_numbers = #tpu.dot_dimension_numbers<[1], [0], [0], [1], [0, 0, 1, 1], [], []>} : vector<8x32xbf16>, vector<32x8xbf16>, vector<8x8xf32> -> vector<8x8xf32>
      %86 = arith.index_cast %arg19 : i32 to index
      %c0_44 = arith.constant 0 : index
      %c0_45 = arith.constant 0 : index
      %87 = vector.load %arg5[%86, %c0_44, %c0_45] : memref<4x1x8xf32, #tpu.memory_space<vmem>>, vector<1x1x8xf32>
      %88 = vector.shape_cast %87 : vector<1x1x8xf32> to vector<1x8xf32>
      %89 = vector.broadcast %88 : vector<1x8xf32> to vector<8x8xf32>
      %90 = arith.addf %85, %89 : vector<8x8xf32>
      %91 = arith.truncf %90 : vector<8x8xf32> to vector<8x8xbf16>
      %92 = arith.index_cast %arg19 : i32 to index
      %c0_46 = arith.constant 0 : index
      %c0_47 = arith.constant 0 : index
      %93 = vector.load %arg6[%92, %c0_46, %c0_47] : memref<4x32x8xbf16, #tpu.memory_space<vmem>>, vector<1x32x8xbf16>
      %94 = vector.shape_cast %93 : vector<1x32x8xbf16> to vector<32x8xbf16>
      %cst_48 = arith.constant dense<0.000000e+00> : vector<8x8xf32>
      %95 = tpu.matmul %2, %94, %cst_48 {dimension_numbers = #tpu.dot_dimension_numbers<[1], [0], [0], [1], [0, 0, 1, 1], [], []>} : vector<8x32xbf16>, vector<32x8xbf16>, vector<8x8xf32> -> vector<8x8xf32>
      %96 = arith.index_cast %arg19 : i32 to index
      %c0_49 = arith.constant 0 : index
      %c0_50 = arith.constant 0 : index
      %97 = vector.load %arg7[%96, %c0_49, %c0_50] : memref<4x1x8xf32, #tpu.memory_space<vmem>>, vector<1x1x8xf32>
      %98 = vector.shape_cast %97 : vector<1x1x8xf32> to vector<1x8xf32>
      %99 = vector.broadcast %98 : vector<1x8xf32> to vector<8x8xf32>
      %100 = arith.addf %95, %99 : vector<8x8xf32>
      %101 = arith.truncf %100 : vector<8x8xf32> to vector<8x8xbf16>
      %cst_51 = arith.constant dense<0.000000e+00> : vector<8x8xf32>
      %102 = tpu.matmul %81, %91, %cst_51 {dimension_numbers = #tpu.dot_dimension_numbers<[1], [1], [0], [0], [0, 0, 1, 0], [], []>} : vector<8x8xbf16>, vector<8x8xbf16>, vector<8x8xf32> -> vector<8x8xf32>
      %cst_52 = arith.constant dense<0xFF800000> : vector<8xf32>
      %103 = vector.multi_reduction <maximumf>, %102, %cst_52 [1] : vector<8x8xf32> to vector<8xf32>
      %104 = vector.shape_cast %103 : vector<8xf32> to vector<8x1xf32>
      %105 = vector.broadcast %104 : vector<8x1xf32> to vector<8x8xf32>
      %106 = arith.subf %102, %105 : vector<8x8xf32>
      %107 = math.exp %106 : vector<8x8xf32>
      %cst_53 = arith.constant dense<0.000000e+00> : vector<8xf32>
      %108 = vector.multi_reduction <add>, %107, %cst_53 [1] : vector<8x8xf32> to vector<8xf32>
      %109 = vector.shape_cast %108 : vector<8xf32> to vector<8x1xf32>
      %110 = tpu.reciprocal %109 {approx = true} : vector<8x1xf32> -> vector<8x1xf32>
      %111 = vector.broadcast %110 : vector<8x1xf32> to vector<8x8xf32>
      %112 = arith.mulf %107, %111 : vector<8x8xf32>
      %113 = arith.truncf %112 : vector<8x8xf32> to vector<8x8xbf16>
      %cst_54 = arith.constant dense<0.000000e+00> : vector<8x8xf32>
      %114 = tpu.matmul %113, %101, %cst_54 {dimension_numbers = #tpu.dot_dimension_numbers<[1], [0], [0], [1], [0, 0, 1, 1], [], []>} : vector<8x8xbf16>, vector<8x8xbf16>, vector<8x8xf32> -> vector<8x8xf32>
      %115 = arith.truncf %114 : vector<8x8xf32> to vector<8x8xbf16>
      %116 = arith.index_cast %arg19 : i32 to index
      %c0_55 = arith.constant 0 : index
      %c0_56 = arith.constant 0 : index
      %117 = vector.load %arg8[%116, %c0_55, %c0_56] : memref<4x8x32xbf16, #tpu.memory_space<vmem>>, vector<1x8x32xbf16>
      %118 = vector.shape_cast %117 : vector<1x8x32xbf16> to vector<8x32xbf16>
      %cst_57 = arith.constant dense<0.000000e+00> : vector<8x32xf32>
      %119 = tpu.matmul %115, %118, %cst_57 {dimension_numbers = #tpu.dot_dimension_numbers<[1], [0], [0], [1], [0, 0, 1, 1], [], []>} : vector<8x8xbf16>, vector<8x32xbf16>, vector<8x32xf32> -> vector<8x32xf32>
      %120 = arith.addf %arg20, %119 : vector<8x32xf32>
      scf.yield %120 : vector<8x32xf32>
    }
    %c4_i32_4 = arith.constant 4 : i32
    %8 = arith.addf %1, %7 : vector<8x32xf32>
    %cst = arith.constant dense<0.000000e+00> : vector<8xf32>
    %9 = vector.multi_reduction <add>, %8, %cst [1] : vector<8x32xf32> to vector<8xf32>
    %10 = vector.shape_cast %9 : vector<8xf32> to vector<8x1xf32>
    %cst_5 = arith.constant 3.200000e+01 : f32
    %11 = vector.broadcast %cst_5 : f32 to vector<8x1xf32>
    %12 = arith.divf %10, %11 : vector<8x1xf32>
    %13 = vector.broadcast %12 : vector<8x1xf32> to vector<8x32xf32>
    %14 = arith.subf %8, %13 : vector<8x32xf32>
    %15 = arith.mulf %14, %14 : vector<8x32xf32>
    %cst_6 = arith.constant dense<0.000000e+00> : vector<8xf32>
    %16 = vector.multi_reduction <add>, %15, %cst_6 [1] : vector<8x32xf32> to vector<8xf32>
    %17 = vector.shape_cast %16 : vector<8xf32> to vector<8x1xf32>
    %cst_7 = arith.constant 3.200000e+01 : f32
    %18 = vector.broadcast %cst_7 : f32 to vector<8x1xf32>
    %19 = arith.divf %17, %18 : vector<8x1xf32>
    %cst_8 = arith.constant 9.99999974E-6 : f32
    %20 = vector.broadcast %cst_8 : f32 to vector<8x1xf32>
    %21 = arith.addf %19, %20 : vector<8x1xf32>
    %22 = math.rsqrt %21 : vector<8x1xf32>
    %23 = vector.broadcast %22 : vector<8x1xf32> to vector<8x32xf32>
    %24 = arith.mulf %14, %23 : vector<8x32xf32>
    %c0_9 = arith.constant 0 : index
    %c0_10 = arith.constant 0 : index
    %25 = vector.load %arg10[%c0_9, %c0_10] : memref<1x32xf32, #tpu.memory_space<vmem>>, vector<1x32xf32>
    %26 = vector.broadcast %25 : vector<1x32xf32> to vector<8x32xf32>
    %27 = arith.mulf %24, %26 : vector<8x32xf32>
    %c0_11 = arith.constant 0 : index
    %c0_12 = arith.constant 0 : index
    %28 = vector.load %arg11[%c0_11, %c0_12] : memref<1x32xf32, #tpu.memory_space<vmem>>, vector<1x32xf32>
    %29 = vector.broadcast %28 : vector<1x32xf32> to vector<8x32xf32>
    %30 = arith.addf %27, %29 : vector<8x32xf32>
    %31 = arith.truncf %30 : vector<8x32xf32> to vector<8x32xbf16>
    %c0_13 = arith.constant 0 : index
    %c0_14 = arith.constant 0 : index
    %32 = vector.load %arg12[%c0_13, %c0_14] : memref<32x64xbf16, #tpu.memory_space<vmem>>, vector<32x64xbf16>
    %cst_15 = arith.constant dense<0.000000e+00> : vector<8x64xf32>
    %33 = tpu.matmul %31, %32, %cst_15 {dimension_numbers = #tpu.dot_dimension_numbers<[1], [0], [0], [1], [0, 0, 1, 1], [], []>} : vector<8x32xbf16>, vector<32x64xbf16>, vector<8x64xf32> -> vector<8x64xf32>
    %c0_16 = arith.constant 0 : index
    %c0_17 = arith.constant 0 : index
    %34 = vector.load %arg13[%c0_16, %c0_17] : memref<1x64xf32, #tpu.memory_space<vmem>>, vector<1x64xf32>
    %35 = vector.broadcast %34 : vector<1x64xf32> to vector<8x64xf32>
    %36 = arith.addf %33, %35 : vector<8x64xf32>
    %cst_18 = arith.constant 0.000000e+00 : f32
    %37 = vector.broadcast %cst_18 : f32 to vector<8x64xf32>
    %38 = arith.maximumf %36, %37 : vector<8x64xf32>
    %39 = arith.truncf %38 : vector<8x64xf32> to vector<8x64xbf16>
    %c0_19 = arith.constant 0 : index
    %c0_20 = arith.constant 0 : index
    %40 = vector.load %arg14[%c0_19, %c0_20] : memref<64x32xbf16, #tpu.memory_space<vmem>>, vector<64x32xbf16>
    %cst_21 = arith.constant dense<0.000000e+00> : vector<8x32xf32>
    %41 = tpu.matmul %39, %40, %cst_21 {dimension_numbers = #tpu.dot_dimension_numbers<[1], [0], [0], [1], [0, 0, 1, 1], [], []>} : vector<8x64xbf16>, vector<64x32xbf16>, vector<8x32xf32> -> vector<8x32xf32>
    %c0_22 = arith.constant 0 : index
    %c0_23 = arith.constant 0 : index
    %42 = vector.load %arg15[%c0_22, %c0_23] : memref<1x32xf32, #tpu.memory_space<vmem>>, vector<1x32xf32>
    %43 = vector.broadcast %42 : vector<1x32xf32> to vector<8x32xf32>
    %44 = arith.addf %41, %43 : vector<8x32xf32>
    %45 = arith.addf %30, %44 : vector<8x32xf32>
    %cst_24 = arith.constant dense<0.000000e+00> : vector<8xf32>
    %46 = vector.multi_reduction <add>, %45, %cst_24 [1] : vector<8x32xf32> to vector<8xf32>
    %47 = vector.shape_cast %46 : vector<8xf32> to vector<8x1xf32>
    %cst_25 = arith.constant 3.200000e+01 : f32
    %48 = vector.broadcast %cst_25 : f32 to vector<8x1xf32>
    %49 = arith.divf %47, %48 : vector<8x1xf32>
    %50 = vector.broadcast %49 : vector<8x1xf32> to vector<8x32xf32>
    %51 = arith.subf %45, %50 : vector<8x32xf32>
    %52 = arith.mulf %51, %51 : vector<8x32xf32>
    %cst_26 = arith.constant dense<0.000000e+00> : vector<8xf32>
    %53 = vector.multi_reduction <add>, %52, %cst_26 [1] : vector<8x32xf32> to vector<8xf32>
    %54 = vector.shape_cast %53 : vector<8xf32> to vector<8x1xf32>
    %cst_27 = arith.constant 3.200000e+01 : f32
    %55 = vector.broadcast %cst_27 : f32 to vector<8x1xf32>
    %56 = arith.divf %54, %55 : vector<8x1xf32>
    %cst_28 = arith.constant 9.99999974E-6 : f32
    %57 = vector.broadcast %cst_28 : f32 to vector<8x1xf32>
    %58 = arith.addf %56, %57 : vector<8x1xf32>
    %59 = math.rsqrt %58 : vector<8x1xf32>
    %60 = vector.broadcast %59 : vector<8x1xf32> to vector<8x32xf32>
    %61 = arith.mulf %51, %60 : vector<8x32xf32>
    %c0_29 = arith.constant 0 : index
    %c0_30 = arith.constant 0 : index
    %62 = vector.load %arg16[%c0_29, %c0_30] : memref<1x32xf32, #tpu.memory_space<vmem>>, vector<1x32xf32>
    %63 = vector.broadcast %62 : vector<1x32xf32> to vector<8x32xf32>
    %64 = arith.mulf %61, %63 : vector<8x32xf32>
    %c0_31 = arith.constant 0 : index
    %c0_32 = arith.constant 0 : index
    %65 = vector.load %arg17[%c0_31, %c0_32] : memref<1x32xf32, #tpu.memory_space<vmem>>, vector<1x32xf32>
    %66 = vector.broadcast %65 : vector<1x32xf32> to vector<8x32xf32>
    %67 = arith.addf %64, %66 : vector<8x32xf32>
    %68 = arith.truncf %67 : vector<8x32xf32> to vector<8x32xbf16>
    %c0_33 = arith.constant 0 : index
    %c0_34 = arith.constant 0 : index
    %c0_35 = arith.constant 0 : index
    %69 = vector.load %arg18[%c0_33, %c0_34, %c0_35] : memref<1x8x32xbf16, #tpu.memory_space<vmem>>, vector<1x8x32xbf16>
    %70 = vector.shape_cast %69 : vector<1x8x32xbf16> to vector<8x32xbf16>
    %71 = vector.shape_cast %68 : vector<8x32xbf16> to vector<1x8x32xbf16>
    tpu.vector_store %arg18[%c0_33, %c0_34, %c0_35], %71 {strides = array<i32>} : memref<1x8x32xbf16, #tpu.memory_space<vmem>>, vector<1x8x32xbf16>,
    return
  }
  func.func @transform_0(%arg0: i32) -> (i32, i32, i32) {
    %c0_i32 = arith.constant 0 : i32
    %c0_i32_0 = arith.constant 0 : i32
    %c0_i32_1 = arith.constant 0 : i32
    return %arg0, %c0_i32, %c0_i32_0 : i32, i32, i32
  }
  func.func @transform_1(%arg0: i32) -> (i32, i32, i32) {
    %c0_i32 = arith.constant 0 : i32
    %c0_i32_0 = arith.constant 0 : i32
    %c0_i32_1 = arith.constant 0 : i32
    %c0_i32_2 = arith.constant 0 : i32
    return %c0_i32, %c0_i32_0, %c0_i32_1 : i32, i32, i32
  }
  func.func @transform_2(%arg0: i32) -> (i32, i32, i32) {
    %c0_i32 = arith.constant 0 : i32
    %c0_i32_0 = arith.constant 0 : i32
    %c0_i32_1 = arith.constant 0 : i32
    %c0_i32_2 = arith.constant 0 : i32
    return %c0_i32, %c0_i32_0, %c0_i32_1 : i32, i32, i32
  }
  func.func @transform_3(%arg0: i32) -> (i32, i32, i32) {
    %c0_i32 = arith.constant 0 : i32
    %c0_i32_0 = arith.constant 0 : i32
    %c0_i32_1 = arith.constant 0 : i32
    %c0_i32_2 = arith.constant 0 : i32
    return %c0_i32, %c0_i32_0, %c0_i32_1 : i32, i32, i32
  }
  func.func @transform_4(%arg0: i32) -> (i32, i32, i32) {
    %c0_i32 = arith.constant 0 : i32
    %c0_i32_0 = arith.constant 0 : i32
    %c0_i32_1 = arith.constant 0 : i32
    %c0_i32_2 = arith.constant 0 : i32
    return %c0_i32, %c0_i32_0, %c0_i32_1 : i32, i32, i32
  }
  func.func @transform_5(%arg0: i32) -> (i32, i32, i32) {
    %c0_i32 = arith.constant 0 : i32
    %c0_i32_0 = arith.constant 0 : i32
    %c0_i32_1 = arith.constant 0 : i32
    %c0_i32_2 = arith.constant 0 : i32
    return %c0_i32, %c0_i32_0, %c0_i32_1 : i32, i32, i32
  }
  func.func @transform_6(%arg0: i32) -> (i32, i32, i32) {
    %c0_i32 = arith.constant 0 : i32
    %c0_i32_0 = arith.constant 0 : i32
    %c0_i32_1 = arith.constant 0 : i32
    %c0_i32_2 = arith.constant 0 : i32
    return %c0_i32, %c0_i32_0, %c0_i32_1 : i32, i32, i32
  }
  func.func @transform_7(%arg0: i32) -> (i32, i32, i32) {
    %c0_i32 = arith.constant 0 : i32
    %c0_i32_0 = arith.constant 0 : i32
    %c0_i32_1 = arith.constant 0 : i32
    %c0_i32_2 = arith.constant 0 : i32
    return %c0_i32, %c0_i32_0, %c0_i32_1 : i32, i32, i32
  }
  func.func @transform_8(%arg0: i32) -> (i32, i32) {
    %c0_i32 = arith.constant 0 : i32
    %c0_i32_0 = arith.constant 0 : i32
    %c0_i32_1 = arith.constant 0 : i32
    return %c0_i32, %c0_i32_0 : i32, i32
  }
  func.func @transform_9(%arg0: i32) -> (i32, i32) {
    %c0_i32 = arith.constant 0 : i32
    %c0_i32_0 = arith.constant 0 : i32
    %c0_i32_1 = arith.constant 0 : i32
    return %c0_i32, %c0_i32_0 : i32, i32
  }
  func.func @transform_10(%arg0: i32) -> (i32, i32) {
    %c0_i32 = arith.constant 0 : i32
    %c0_i32_0 = arith.constant 0 : i32
    %c0_i32_1 = arith.constant 0 : i32
    return %c0_i32, %c0_i32_0 : i32, i32
  }
  func.func @transform_11(%arg0: i32) -> (i32, i32) {
    %c0_i32 = arith.constant 0 : i32
    %c0_i32_0 = arith.constant 0 : i32
    %c0_i32_1 = arith.constant 0 : i32
    return %c0_i32, %c0_i32_0 : i32, i32
  }
  func.func @transform_12(%arg0: i32) -> (i32, i32) {
    %c0_i32 = arith.constant 0 : i32
    %c0_i32_0 = arith.constant 0 : i32
    %c0_i32_1 = arith.constant 0 : i32
    return %c0_i32, %c0_i32_0 : i32, i32
  }
  func.func @transform_13(%arg0: i32) -> (i32, i32) {
    %c0_i32 = arith.constant 0 : i32
    %c0_i32_0 = arith.constant 0 : i32
    %c0_i32_1 = arith.constant 0 : i32
    return %c0_i32, %c0_i32_0 : i32, i32
  }
  func.func @transform_14(%arg0: i32) -> (i32, i32) {
    %c0_i32 = arith.constant 0 : i32
    %c0_i32_0 = arith.constant 0 : i32
    %c0_i32_1 = arith.constant 0 : i32
    return %c0_i32, %c0_i32_0 : i32, i32
  }
  func.func @transform_15(%arg0: i32) -> (i32, i32) {
    %c0_i32 = arith.constant 0 : i32
    %c0_i32_0 = arith.constant 0 : i32
    %c0_i32_1 = arith.constant 0 : i32
    return %c0_i32, %c0_i32_0 : i32, i32
  }
  func.func @transform_16(%arg0: i32) -> (i32, i32) {
    %c0_i32 = arith.constant 0 : i32
    %c0_i32_0 = arith.constant 0 : i32
    %c0_i32_1 = arith.constant 0 : i32
    return %c0_i32, %c0_i32_0 : i32, i32
  }
  func.func @transform_17(%arg0: i32) -> (i32, i32, i32) {
    %c0_i32 = arith.constant 0 : i32
    %c0_i32_0 = arith.constant 0 : i32
    %c0_i32_1 = arith.constant 0 : i32
    return %arg0, %c0_i32, %c0_i32_0 : i32, i32, i32
  }
}

</mosaic_0001>

<llo_original>
// kernel: tpu_custom_call.1
$region0: #{tpu_custom_call.1}
  #allocation0 [shape = 'u32[]', space=smem, size = 0x4, offset = 0x4, fixed_abs, tag = 'smem constant byte address 0x4 - core index']
  #allocation1 [shape = 'u32[72,128]{1,0:T(1,128)}', space=vmem, size = 0x9000, scoped, tag = 'internal scratch']
  %s0 = inlined_call_operand.hbm [shape: f32[8,128], index: 0, kind: input, shape index: {}]
  %s1 = inlined_call_operand.hbm [shape: f32[2,8,128], index: 1, kind: input, shape index: {}]
  %s2 = inlined_call_operand.hbm [shape: f32[2,8,128], index: 2, kind: output, shape index: {}]
  %s3 = sld [smem:[#allocation0]]
  $region49: #{tpu_custom_call.1} parent=0
    _
  %s5 = ssub.s32 1, %s3
  %s6 = scalar_select 0, %s5, %s3
  $region1: #{tpu_custom_call.1} parent=0
    #allocation2 [shape = 'u8[4096]{0}', space=vmem, size = 0x1000, scoped, tag = 'input window, operand 0, single buffered']
    #allocation3 [shape = 's32[2]{0}', space=sflag, size = 0x8, scoped, tag = 'scoped memory for tpu_custom_call.1']
    #allocation4 [shape = 's32[2]{0}', space=sflag, size = 0x8, scoped, tag = 'scoped memory for tpu_custom_call.1']
    #allocation5 [shape = 'u8[8192]{0}', space=vmem, size = 0x2000, scoped, tag = 'input window, operand 1']
    #allocation6 [shape = 's32[2]{0}', space=sflag, size = 0x8, scoped, tag = 'scoped memory for tpu_custom_call.1']
    #allocation7 [shape = 'u8[8192]{0}', space=vmem, size = 0x2000, scoped, tag = 'output window, operand 0']
    %7 = vsyncpa [#allocation3], 0
    %8 = vsyncpa [#allocation6], 0
    %s9 = scalar_lea.sflag [#allocation6], 1
    %10 = vsyncpa %s9, 0
    %11 = vsyncpa [#allocation4], 0
    %s12 = scalar_lea.sflag [#allocation4], 1
    %13 = vsyncpa %s12, 0
    loop: start=0, step=1, limit=4
    $region2: #{tpu_custom_call.1} parent=1 // loop_pre_header
      _
    $region3: #{tpu_custom_call.1} parent=1 // loop_header
      %s15 = sphi 0, %s19
      %p16 = scmp.ge.s32.totalorder %s15, 4
      %s23 = sphi 0, %s23
      %s25 = sphi 0, %s23
      %s26 = sphi 0, %s25
      %s40 = sphi 0, %s26
      %s46 = sphi 0, %s48
      %s49 = sphi 0, %s46
      %s50 = sphi 0, %s49
      %s66 = sphi 0, %s50
      %s72 = sphi 0, %s74
      %s75 = sphi 0, %s72
      %s76 = sphi 0, %s75
      %s92 = sphi 0, %s76
    $region4: #{tpu_custom_call.1} parent=1 // loop_header_branch
      %18 = sbr.rel (%p16) target = $region8
    $region5: #{tpu_custom_call.1} parent=1 // loop_body
      %s20 = ssub.s32 %s15, 1
      %s21 = ssub.s32 %s15, 2
      %s22 = sadd.s32 %s15, 1
      %s24 = sadd.s32 %s23, 1
      %p27 = scmp.eq.s32.totalorder %s15, 1
      %p28 = scmp.ne.s32.totalorder %s23, %s25
      %p29 = scmp.eq.s32.totalorder %s15, 0
      %p30 = por %p28, %p29
      %p31 = scmp.ne.s32.totalorder %s23, %s25
      %p32 = scmp.eq.s32.totalorder %s20, 1
      %p33 = por %p31, %p32
      %p34 = scmp.ne.s32.totalorder %s25, %s26
      %p35 = scmp.eq.s32.totalorder %s20, 0
      %p36 = por %p34, %p35
      %p37 = scmp.ne.s32.totalorder %s25, %s26
      %p38 = scmp.eq.s32.totalorder %s21, 1
      %p39 = por %p37, %p38
      %p41 = scmp.ne.s32.totalorder %s26, %s40
      %p42 = scmp.eq.s32.totalorder %s21, 0
      %p43 = por %p41, %p42
      %s44 = ssub.s32 %s15, %s22
      %p45 = scmp.eq.s32.totalorder %s44, 0
      %s47 = sadd.s32 %s46, 1
      %s48 = scalar_select %p45, %s46, %s47
      %p51 = pneg %p45
      %p52 = scmp.eq.s32.totalorder %s15, 1
      %p53 = por %p51, %p52
      %p54 = scmp.ne.s32.totalorder %s46, %s49
      %p55 = scmp.eq.s32.totalorder %s15, 0
      %p56 = por %p54, %p55
      %p57 = scmp.ne.s32.totalorder %s46, %s49
      %p58 = scmp.eq.s32.totalorder %s20, 1
      %p59 = por %p57, %p58
      %p60 = scmp.ne.s32.totalorder %s49, %s50
      %p61 = scmp.eq.s32.totalorder %s20, 0
      %p62 = por %p60, %p61
      %p63 = scmp.ne.s32.totalorder %s49, %s50
      %p64 = scmp.eq.s32.totalorder %s21, 1
      %p65 = por %p63, %p64
      %p67 = scmp.ne.s32.totalorder %s50, %s66
      %p68 = scmp.eq.s32.totalorder %s21, 0
      %p69 = por %p67, %p68
      %s70 = ssub.s32 %s15, %s22
      %p71 = scmp.eq.s32.totalorder %s70, 0
      %s73 = sadd.s32 %s72, 1
      %s74 = scalar_select %p71, %s72, %s73
      %p77 = pneg %p71
      %p78 = scmp.eq.s32.totalorder %s15, 1
      %p79 = por %p77, %p78
      %p80 = scmp.ne.s32.totalorder %s72, %s75
      %p81 = scmp.eq.s32.totalorder %s15, 0
      %p82 = por %p80, %p81
      %p83 = scmp.ne.s32.totalorder %s72, %s75
      %p84 = scmp.eq.s32.totalorder %s20, 1
      %p85 = por %p83, %p84
      %p86 = scmp.ne.s32.totalorder %s75, %s76
      %p87 = scmp.eq.s32.totalorder %s20, 0
      %p88 = por %p86, %p87
      %p89 = scmp.ne.s32.totalorder %s75, %s76
      %p90 = scmp.eq.s32.totalorder %s21, 1
      %p91 = por %p89, %p90
      %p93 = scmp.ne.s32.totalorder %s76, %s92
      %p94 = scmp.eq.s32.totalorder %s21, 0
      %p95 = por %p93, %p94
      %p96 = scmp.le.s32.totalorder 1, %s15
      %p97 = scmp.lt.s32.totalorder %s15, 3
      %p98 = pnand %p96, %p97
      %p99 = pneg %p98
      // Predicated region
      $region9: #{tpu_custom_call.1} parent=5 // pred_check
        _
      $region10: #{tpu_custom_call.1} parent=5 // pred_check_branch
        %101 = sbr.rel (%p98) target = $region12
      $region11: #{tpu_custom_call.1} parent=5 // pred_region
        %s102 = ssub.s32 %s15, 1
        // Predicated region
        $region13: #{tpu_custom_call.1} parent=11 // pred_check
          %p103 = pneg %p36
        $region14: #{tpu_custom_call.1} parent=11 // pred_check_branch
          %105 = sbr.rel (%p103) target = $region16
        $region15: #{tpu_custom_call.1} parent=11 // pred_region
          %107 = vsyncadd [#allocation3], 0
          %s109 = sshll.u32 %s0, 4
          %s110 = int_to_ptr.hbm [resolvable:$true] %s109
          %s111 = sshll.u32 [#allocation2], 4
          %s112 = int_to_ptr.vmem [resolvable:$true] %s111
          %114 = dma.hbm_to_vmem [thread:$0]  %s110, 128, %s112, [#allocation3]
        $region16: #{tpu_custom_call.1} parent=11 // pred_fallthru
          _
      $region12: #{tpu_custom_call.1} parent=5 // pred_fallthru
        _
      %p115 = scmp.lt.s32.totalorder %s15, 2
      // Predicated region
      $region17: #{tpu_custom_call.1} parent=5 // pred_check
        %p116 = pneg %p115
      $region18: #{tpu_custom_call.1} parent=5 // pred_check_branch
        %118 = sbr.rel (%p116) target = $region20
      $region19: #{tpu_custom_call.1} parent=5 // pred_region
        // Predicated region
        $region21: #{tpu_custom_call.1} parent=19 // pred_check
          %p119 = pneg %p56
        $region22: #{tpu_custom_call.1} parent=19 // pred_check_branch
          %121 = sbr.rel (%p119) target = $region24
        $region23: #{tpu_custom_call.1} parent=19 // pred_region
          %s122 = sand.u32 %s46, 1
          %s123 = scalar_lea.sflag [#allocation6], %s122
          %s124 = sand.u32 %s46, 1
          %s125 = smul.addr %s124, 8
          %s126 = scalar_lea.vmem [#allocation5], %s125
          %128 = vsyncadd %s123, 0
          %s129 = smul.addr %s15, 8
          %s130 = scalar_lea.hbm %s1, %s129
          %s132 = sshll.u32 %s130, 4
          %s133 = int_to_ptr.hbm [resolvable:$true] %s132
          %s134 = sshll.u32 %s126, 4
          %s135 = int_to_ptr.vmem [resolvable:$true] %s134
          %137 = dma.hbm_to_vmem [thread:$0]  %s133, 128, %s135, %s123
        $region24: #{tpu_custom_call.1} parent=19 // pred_fallthru
          _
      $region20: #{tpu_custom_call.1} parent=5 // pred_fallthru
        _
      %p138 = scmp.le.s32.totalorder 1, %s15
      %p139 = scmp.lt.s32.totalorder %s15, 3
      %p140 = pnand %p138, %p139
      %p141 = pneg %p140
      // Predicated region
      $region25: #{tpu_custom_call.1} parent=5 // pred_check
        _
      $region26: #{tpu_custom_call.1} parent=5 // pred_check_branch
        %143 = sbr.rel (%p140) target = $region28
      $region27: #{tpu_custom_call.1} parent=5 // pred_region
        %s144 = ssub.s32 %s15, 1
        // Predicated region
        $region29: #{tpu_custom_call.1} parent=27 // pred_check
          %p145 = pneg %p36
        $region30: #{tpu_custom_call.1} parent=27 // pred_check_branch
          %147 = sbr.rel (%p145) target = $region32
        $region31: #{tpu_custom_call.1} parent=27 // pred_region
          %149 = dma.done [#allocation3], 128
        $region32: #{tpu_custom_call.1} parent=27 // pred_fallthru
          _
        %s150 = sand.u32 %s49, 1
        %s151 = scalar_lea.sflag [#allocation6], %s150
        %s152 = sand.u32 %s49, 1
        %s153 = smul.addr %s152, 8
        %s154 = scalar_lea.vmem [#allocation5], %s153
        // Predicated region
        $region33: #{tpu_custom_call.1} parent=27 // pred_check
          %p155 = pneg %p62
        $region34: #{tpu_custom_call.1} parent=27 // pred_check_branch
          %157 = sbr.rel (%p155) target = $region36
        $region35: #{tpu_custom_call.1} parent=27 // pred_region
          %159 = dma.done %s151, 128
        $region36: #{tpu_custom_call.1} parent=27 // pred_fallthru
          _
        %p160 = pneg %p36
        %p161 = pneg %p33
        %s162 = sand.u32 %s49, 1
        %s163 = scalar_lea.sflag [#allocation6], %s162
        %s164 = sand.u32 %s49, 1
        %s165 = smul.addr %s164, 8
        %s166 = scalar_lea.vmem [#allocation5], %s165
        %p167 = pneg %p62
        %p168 = pneg %p59
        %p169 = pneg %p88
        %p170 = pneg %p85
        %s171 = sand.u32 %s75, 1
        %s172 = scalar_lea.sflag [#allocation4], %s171
        %s173 = sand.u32 %s75, 1
        %s174 = smul.addr %s173, 8
        %s175 = scalar_lea.vmem [#allocation7], %s174
        %v176 = vld [vmem:[%s154] sm:$0xff]
        %v177 = vld [vmem:[#allocation2] sm:$0xff]
        %v178 = vadd.f32 %v176, %v177
        %179 = vst [vmem:[%s175] sm:$0xff] %v178
        %s180 = sand.u32 %s75, 1
        %s181 = scalar_lea.sflag [#allocation4], %s180
        %s182 = sand.u32 %s75, 1
        %s183 = smul.addr %s182, 8
        %s184 = scalar_lea.vmem [#allocation7], %s183
        // Predicated region
        $region37: #{tpu_custom_call.1} parent=27 // pred_check
          %p185 = pneg %p85
        $region38: #{tpu_custom_call.1} parent=27 // pred_check_branch
          %187 = sbr.rel (%p185) target = $region40
        $region39: #{tpu_custom_call.1} parent=27 // pred_region
          %189 = vsyncadd %s181, 0
          %s190 = smul.addr %s20, 8
          %s191 = scalar_lea.hbm %s2, %s190
          %s193 = sshll.u32 %s184, 4
          %s194 = int_to_ptr.vmem [resolvable:$true] %s193
          %s195 = sshll.u32 %s191, 4
          %s196 = int_to_ptr.hbm [resolvable:$true] %s195
          %198 = dma.vmem_to_hbm [thread:$0]  %s194, 128, %s196, %s181
        $region40: #{tpu_custom_call.1} parent=27 // pred_fallthru
          _
      $region28: #{tpu_custom_call.1} parent=5 // pred_fallthru
        _
      %p199 = scmp.le.s32.totalorder 2, %s15
      // Predicated region
      $region41: #{tpu_custom_call.1} parent=5 // pred_check
        %p200 = pneg %p199
      $region42: #{tpu_custom_call.1} parent=5 // pred_check_branch
        %202 = sbr.rel (%p200) target = $region44
      $region43: #{tpu_custom_call.1} parent=5 // pred_region
        %s203 = ssub.s32 %s15, 2
        // Predicated region
        $region45: #{tpu_custom_call.1} parent=43 // pred_check
          %p204 = pneg %p91
        $region46: #{tpu_custom_call.1} parent=43 // pred_check_branch
          %206 = sbr.rel (%p204) target = $region48
        $region47: #{tpu_custom_call.1} parent=43 // pred_region
          %s207 = sand.u32 %s76, 1
          %s208 = scalar_lea.sflag [#allocation4], %s207
          %s209 = sand.u32 %s76, 1
          %s210 = smul.addr %s209, 8
          %s211 = scalar_lea.vmem [#allocation7], %s210
          %213 = dma.done %s208, 128
        $region48: #{tpu_custom_call.1} parent=43 // pred_fallthru
          _
      $region44: #{tpu_custom_call.1} parent=5 // pred_fallthru
        _
    $region6: #{tpu_custom_call.1} parent=1 // loop_footer
      %s19 = sadd.s32 1, %s15
    $region7: #{tpu_custom_call.1} parent=1 // loop_footer_branch
      %14 = sbr.rel target = $region3
    $region8: #{tpu_custom_call.1} parent=1 // loop_exit
      _
    %214 = vsyncpa [#allocation3], 1
    %s215 = scalar_lea.sflag [#allocation3], 1
    %216 = vsyncpa %s215, 1
    %217 = vsyncpa [#allocation6], 1
    %s218 = scalar_lea.sflag [#allocation6], 1
    %219 = vsyncpa %s218, 1
    %220 = vsyncpa [#allocation4], 1
    %s221 = scalar_lea.sflag [#allocation4], 1
    %222 = vsyncpa %s221, 1

// kernel: tpu_custom_call.1
$region0: #{tpu_custom_call.1}
  #allocation0 [shape = 'u32[]', space=smem, size = 0x4, offset = 0x4, fixed_abs, tag = 'smem constant byte address 0x4 - core index']
  #allocation1 [shape = 'u32[72,128]{1,0:T(1,128)}', space=vmem, size = 0x9000, scoped, tag = 'internal scratch']
  %s0 = inlined_call_operand.vmem [shape: f32[2,8,32], index: 0, kind: input, shape index: {}]
  %s1 = inlined_call_operand.vmem [shape: bf16[4,32,8], index: 1, kind: input, shape index: {}]
  %s2 = inlined_call_operand.vmem [shape: f32[4,1,8], index: 2, kind: input, shape index: {}]
  %s3 = inlined_call_operand.vmem [shape: bf16[4,32,8], index: 3, kind: input, shape index: {}]
  %s4 = inlined_call_operand.vmem [shape: f32[4,1,8], index: 4, kind: input, shape index: {}]
  %s5 = inlined_call_operand.vmem [shape: bf16[4,32,8], index: 5, kind: input, shape index: {}]
  %s6 = inlined_call_operand.vmem [shape: f32[4,1,8], index: 6, kind: input, shape index: {}]
  %s7 = inlined_call_operand.vmem [shape: bf16[4,8,32], index: 7, kind: input, shape index: {}]
  %s8 = inlined_call_operand.vmem [shape: f32[1,32], index: 8, kind: input, shape index: {}]
  %s9 = inlined_call_operand.vmem [shape: f32[1,32], index: 9, kind: input, shape index: {}]
  %s10 = inlined_call_operand.vmem [shape: f32[1,32], index: 10, kind: input, shape index: {}]
  %s11 = inlined_call_operand.vmem [shape: bf16[32,64], index: 11, kind: input, shape index: {}]
  %s12 = inlined_call_operand.vmem [shape: f32[1,64], index: 12, kind: input, shape index: {}]
  %s13 = inlined_call_operand.vmem [shape: bf16[64,32], index: 13, kind: input, shape index: {}]
  %s14 = inlined_call_operand.vmem [shape: f32[1,32], index: 14, kind: input, shape index: {}]
  %s15 = inlined_call_operand.vmem [shape: f32[1,32], index: 15, kind: input, shape index: {}]
  %s16 = inlined_call_operand.vmem [shape: f32[1,32], index: 16, kind: input, shape index: {}]
  %s17 = inlined_call_operand.hbm [shape: bf16[2,8,32], index: 17, kind: output, shape index: {}]
  %s18 = sld [smem:[#allocation0]]
  $region108: #{tpu_custom_call.1} parent=0
    _
  %s20 = ssub.s32 1, %s18
  %s21 = scalar_select 0, %s20, %s18
  $region1: #{tpu_custom_call.1} parent=0
    #allocation2 [shape = 'u8[4096]{0}', space=vmem, size = 0x1000, scoped, tag = 'output window, operand 0']
    #allocation3 [shape = 's32[2]{0}', space=sflag, size = 0x8, scoped, tag = 'scoped memory for tpu_custom_call.1']
    %22 = vsyncpa [#allocation3], 0
    %s23 = scalar_lea.sflag [#allocation3], 1
    %24 = vsyncpa %s23, 0
    loop: start=0, step=1, limit=4
    $region2: #{tpu_custom_call.1} parent=1 // loop_pre_header
      _
    $region3: #{tpu_custom_call.1} parent=1 // loop_header
      %s26 = sphi 0, %s30
      %p27 = scmp.ge.s32.totalorder %s26, 4
      %s36 = sphi 0, %s38
      %s39 = sphi 0, %s36
      %s40 = sphi 0, %s39
      %s56 = sphi 0, %s40
      %s60 = sphi 0, %s60
      %s62 = sphi 0, %s60
      %s63 = sphi 0, %s62
      %s77 = sphi 0, %s63
      %s81 = sphi 0, %s81
      %s83 = sphi 0, %s81
      %s84 = sphi 0, %s83
      %s98 = sphi 0, %s84
      %s102 = sphi 0, %s102
      %s104 = sphi 0, %s102
      %s105 = sphi 0, %s104
      %s119 = sphi 0, %s105
      %s123 = sphi 0, %s123
      %s125 = sphi 0, %s123
      %s126 = sphi 0, %s125
      %s140 = sphi 0, %s126
      %s144 = sphi 0, %s144
      %s146 = sphi 0, %s144
      %s147 = sphi 0, %s146
      %s161 = sphi 0, %s147
      %s165 = sphi 0, %s165
      %s167 = sphi 0, %s165
      %s168 = sphi 0, %s167
      %s182 = sphi 0, %s168
      %s186 = sphi 0, %s186
      %s188 = sphi 0, %s186
      %s189 = sphi 0, %s188
      %s203 = sphi 0, %s189
      %s207 = sphi 0, %s207
      %s209 = sphi 0, %s207
      %s210 = sphi 0, %s209
      %s224 = sphi 0, %s210
      %s228 = sphi 0, %s228
      %s230 = sphi 0, %s228
      %s231 = sphi 0, %s230
      %s245 = sphi 0, %s231
      %s249 = sphi 0, %s249
      %s251 = sphi 0, %s249
      %s252 = sphi 0, %s251
      %s266 = sphi 0, %s252
      %s270 = sphi 0, %s270
      %s272 = sphi 0, %s270
      %s273 = sphi 0, %s272
      %s287 = sphi 0, %s273
      %s291 = sphi 0, %s291
      %s293 = sphi 0, %s291
      %s294 = sphi 0, %s293
      %s308 = sphi 0, %s294
      %s312 = sphi 0, %s312
      %s314 = sphi 0, %s312
      %s315 = sphi 0, %s314
      %s329 = sphi 0, %s315
      %s333 = sphi 0, %s333
      %s335 = sphi 0, %s333
      %s336 = sphi 0, %s335
      %s350 = sphi 0, %s336
      %s354 = sphi 0, %s354
      %s356 = sphi 0, %s354
      %s357 = sphi 0, %s356
      %s371 = sphi 0, %s357
      %s375 = sphi 0, %s375
      %s377 = sphi 0, %s375
      %s378 = sphi 0, %s377
      %s392 = sphi 0, %s378
      %s398 = sphi 0, %s400
      %s401 = sphi 0, %s398
      %s402 = sphi 0, %s401
      %s418 = sphi 0, %s402
    $region4: #{tpu_custom_call.1} parent=1 // loop_header_branch
      %29 = sbr.rel (%p27) target = $region8
    $region5: #{tpu_custom_call.1} parent=1 // loop_body
      %s31 = ssub.s32 %s26, 1
      %s32 = ssub.s32 %s26, 2
      %s33 = sadd.s32 %s26, 1
      %s34 = ssub.s32 %s26, %s33
      %p35 = scmp.eq.s32.totalorder %s34, 0
      %s37 = sadd.s32 %s36, 1
      %s38 = scalar_select %p35, %s36, %s37
      %p41 = pneg %p35
      %p42 = scmp.eq.s32.totalorder %s26, 1
      %p43 = por %p41, %p42
      %p44 = scmp.ne.s32.totalorder %s36, %s39
      %p45 = scmp.eq.s32.totalorder %s26, 0
      %p46 = por %p44, %p45
      %p47 = scmp.ne.s32.totalorder %s36, %s39
      %p48 = scmp.eq.s32.totalorder %s31, 1
      %p49 = por %p47, %p48
      %p50 = scmp.ne.s32.totalorder %s39, %s40
      %p51 = scmp.eq.s32.totalorder %s31, 0
      %p52 = por %p50, %p51
      %p53 = scmp.ne.s32.totalorder %s39, %s40
      %p54 = scmp.eq.s32.totalorder %s32, 1
      %p55 = por %p53, %p54
      %p57 = scmp.ne.s32.totalorder %s40, %s56
      %p58 = scmp.eq.s32.totalorder %s32, 0
      %p59 = por %p57, %p58
      %s61 = sadd.s32 %s60, 1
      %p64 = scmp.eq.s32.totalorder %s26, 1
      %p65 = scmp.ne.s32.totalorder %s60, %s62
      %p66 = scmp.eq.s32.totalorder %s26, 0
      %p67 = por %p65, %p66
      %p68 = scmp.ne.s32.totalorder %s60, %s62
      %p69 = scmp.eq.s32.totalorder %s31, 1
      %p70 = por %p68, %p69
      %p71 = scmp.ne.s32.totalorder %s62, %s63
      %p72 = scmp.eq.s32.totalorder %s31, 0
      %p73 = por %p71, %p72
      %p74 = scmp.ne.s32.totalorder %s62, %s63
      %p75 = scmp.eq.s32.totalorder %s32, 1
      %p76 = por %p74, %p75
      %p78 = scmp.ne.s32.totalorder %s63, %s77
      %p79 = scmp.eq.s32.totalorder %s32, 0
      %p80 = por %p78, %p79
      %s82 = sadd.s32 %s81, 1
      %p85 = scmp.eq.s32.totalorder %s26, 1
      %p86 = scmp.ne.s32.totalorder %s81, %s83
      %p87 = scmp.eq.s32.totalorder %s26, 0
      %p88 = por %p86, %p87
      %p89 = scmp.ne.s32.totalorder %s81, %s83
      %p90 = scmp.eq.s32.totalorder %s31, 1
      %p91 = por %p89, %p90
      %p92 = scmp.ne.s32.totalorder %s83, %s84
      %p93 = scmp.eq.s32.totalorder %s31, 0
      %p94 = por %p92, %p93
      %p95 = scmp.ne.s32.totalorder %s83, %s84
      %p96 = scmp.eq.s32.totalorder %s32, 1
      %p97 = por %p95, %p96
      %p99 = scmp.ne.s32.totalorder %s84, %s98
      %p100 = scmp.eq.s32.totalorder %s32, 0
      %p101 = por %p99, %p100
      %s103 = sadd.s32 %s102, 1
      %p106 = scmp.eq.s32.totalorder %s26, 1
      %p107 = scmp.ne.s32.totalorder %s102, %s104
      %p108 = scmp.eq.s32.totalorder %s26, 0
      %p109 = por %p107, %p108
      %p110 = scmp.ne.s32.totalorder %s102, %s104
      %p111 = scmp.eq.s32.totalorder %s31, 1
      %p112 = por %p110, %p111
      %p113 = scmp.ne.s32.totalorder %s104, %s105
      %p114 = scmp.eq.s32.totalorder %s31, 0
      %p115 = por %p113, %p114
      %p116 = scmp.ne.s32.totalorder %s104, %s105
      %p117 = scmp.eq.s32.totalorder %s32, 1
      %p118 = por %p116, %p117
      %p120 = scmp.ne.s32.totalorder %s105, %s119
      %p121 = scmp.eq.s32.totalorder %s32, 0
      %p122 = por %p120, %p121
      %s124 = sadd.s32 %s123, 1
      %p127 = scmp.eq.s32.totalorder %s26, 1
      %p128 = scmp.ne.s32.totalorder %s123, %s125
      %p129 = scmp.eq.s32.totalorder %s26, 0
      %p130 = por %p128, %p129
      %p131 = scmp.ne.s32.totalorder %s123, %s125
      %p132 = scmp.eq.s32.totalorder %s31, 1
      %p133 = por %p131, %p132
      %p134 = scmp.ne.s32.totalorder %s125, %s126
      %p135 = scmp.eq.s32.totalorder %s31, 0
      %p136 = por %p134, %p135
      %p137 = scmp.ne.s32.totalorder %s125, %s126
      %p138 = scmp.eq.s32.totalorder %s32, 1
      %p139 = por %p137, %p138
      %p141 = scmp.ne.s32.totalorder %s126, %s140
      %p142 = scmp.eq.s32.totalorder %s32, 0
      %p143 = por %p141, %p142
      %s145 = sadd.s32 %s144, 1
      %p148 = scmp.eq.s32.totalorder %s26, 1
      %p149 = scmp.ne.s32.totalorder %s144, %s146
      %p150 = scmp.eq.s32.totalorder %s26, 0
      %p151 = por %p149, %p150
      %p152 = scmp.ne.s32.totalorder %s144, %s146
      %p153 = scmp.eq.s32.totalorder %s31, 1
      %p154 = por %p152, %p153
      %p155 = scmp.ne.s32.totalorder %s146, %s147
      %p156 = scmp.eq.s32.totalorder %s31, 0
      %p157 = por %p155, %p156
      %p158 = scmp.ne.s32.totalorder %s146, %s147
      %p159 = scmp.eq.s32.totalorder %s32, 1
      %p160 = por %p158, %p159
      %p162 = scmp.ne.s32.totalorder %s147, %s161
      %p163 = scmp.eq.s32.totalorder %s32, 0
      %p164 = por %p162, %p163
      %s166 = sadd.s32 %s165, 1
      %p169 = scmp.eq.s32.totalorder %s26, 1
      %p170 = scmp.ne.s32.totalorder %s165, %s167
      %p171 = scmp.eq.s32.totalorder %s26, 0
      %p172 = por %p170, %p171
      %p173 = scmp.ne.s32.totalorder %s165, %s167
      %p174 = scmp.eq.s32.totalorder %s31, 1
      %p175 = por %p173, %p174
      %p176 = scmp.ne.s32.totalorder %s167, %s168
      %p177 = scmp.eq.s32.totalorder %s31, 0
      %p178 = por %p176, %p177
      %p179 = scmp.ne.s32.totalorder %s167, %s168
      %p180 = scmp.eq.s32.totalorder %s32, 1
      %p181 = por %p179, %p180
      %p183 = scmp.ne.s32.totalorder %s168, %s182
      %p184 = scmp.eq.s32.totalorder %s32, 0
      %p185 = por %p183, %p184
      %s187 = sadd.s32 %s186, 1
      %p190 = scmp.eq.s32.totalorder %s26, 1
      %p191 = scmp.ne.s32.totalorder %s186, %s188
      %p192 = scmp.eq.s32.totalorder %s26, 0
      %p193 = por %p191, %p192
      %p194 = scmp.ne.s32.totalorder %s186, %s188
      %p195 = scmp.eq.s32.totalorder %s31, 1
      %p196 = por %p194, %p195
      %p197 = scmp.ne.s32.totalorder %s188, %s189
      %p198 = scmp.eq.s32.totalorder %s31, 0
      %p199 = por %p197, %p198
      %p200 = scmp.ne.s32.totalorder %s188, %s189
      %p201 = scmp.eq.s32.totalorder %s32, 1
      %p202 = por %p200, %p201
      %p204 = scmp.ne.s32.totalorder %s189, %s203
      %p205 = scmp.eq.s32.totalorder %s32, 0
      %p206 = por %p204, %p205
      %s208 = sadd.s32 %s207, 1
      %p211 = scmp.eq.s32.totalorder %s26, 1
      %p212 = scmp.ne.s32.totalorder %s207, %s209
      %p213 = scmp.eq.s32.totalorder %s26, 0
      %p214 = por %p212, %p213
      %p215 = scmp.ne.s32.totalorder %s207, %s209
      %p216 = scmp.eq.s32.totalorder %s31, 1
      %p217 = por %p215, %p216
      %p218 = scmp.ne.s32.totalorder %s209, %s210
      %p219 = scmp.eq.s32.totalorder %s31, 0
      %p220 = por %p218, %p219
      %p221 = scmp.ne.s32.totalorder %s209, %s210
      %p222 = scmp.eq.s32.totalorder %s32, 1
      %p223 = por %p221, %p222
      %p225 = scmp.ne.s32.totalorder %s210, %s224
      %p226 = scmp.eq.s32.totalorder %s32, 0
      %p227 = por %p225, %p226
      %s229 = sadd.s32 %s228, 1
      %p232 = scmp.eq.s32.totalorder %s26, 1
      %p233 = scmp.ne.s32.totalorder %s228, %s230
      %p234 = scmp.eq.s32.totalorder %s26, 0
      %p235 = por %p233, %p234
      %p236 = scmp.ne.s32.totalorder %s228, %s230
      %p237 = scmp.eq.s32.totalorder %s31, 1
      %p238 = por %p236, %p237
      %p239 = scmp.ne.s32.totalorder %s230, %s231
      %p240 = scmp.eq.s32.totalorder %s31, 0
      %p241 = por %p239, %p240
      %p242 = scmp.ne.s32.totalorder %s230, %s231
      %p243 = scmp.eq.s32.totalorder %s32, 1
      %p244 = por %p242, %p243
      %p246 = scmp.ne.s32.totalorder %s231, %s245
      %p247 = scmp.eq.s32.totalorder %s32, 0
      %p248 = por %p246, %p247
      %s250 = sadd.s32 %s249, 1
      %p253 = scmp.eq.s32.totalorder %s26, 1
      %p254 = scmp.ne.s32.totalorder %s249, %s251
      %p255 = scmp.eq.s32.totalorder %s26, 0
      %p256 = por %p254, %p255
      %p257 = scmp.ne.s32.totalorder %s249, %s251
      %p258 = scmp.eq.s32.totalorder %s31, 1
      %p259 = por %p257, %p258
      %p260 = scmp.ne.s32.totalorder %s251, %s252
      %p261 = scmp.eq.s32.totalorder %s31, 0
      %p262 = por %p260, %p261
      %p263 = scmp.ne.s32.totalorder %s251, %s252
      %p264 = scmp.eq.s32.totalorder %s32, 1
      %p265 = por %p263, %p264
      %p267 = scmp.ne.s32.totalorder %s252, %s266
      %p268 = scmp.eq.s32.totalorder %s32, 0
      %p269 = por %p267, %p268
      %s271 = sadd.s32 %s270, 1
      %p274 = scmp.eq.s32.totalorder %s26, 1
      %p275 = scmp.ne.s32.totalorder %s270, %s272
      %p276 = scmp.eq.s32.totalorder %s26, 0
      %p277 = por %p275, %p276
      %p278 = scmp.ne.s32.totalorder %s270, %s272
      %p279 = scmp.eq.s32.totalorder %s31, 1
      %p280 = por %p278, %p279
      %p281 = scmp.ne.s32.totalorder %s272, %s273
      %p282 = scmp.eq.s32.totalorder %s31, 0
      %p283 = por %p281, %p282
      %p284 = scmp.ne.s32.totalorder %s272, %s273
      %p285 = scmp.eq.s32.totalorder %s32, 1
      %p286 = por %p284, %p285
      %p288 = scmp.ne.s32.totalorder %s273, %s287
      %p289 = scmp.eq.s32.totalorder %s32, 0
      %p290 = por %p288, %p289
      %s292 = sadd.s32 %s291, 1
      %p295 = scmp.eq.s32.totalorder %s26, 1
      %p296 = scmp.ne.s32.totalorder %s291, %s293
      %p297 = scmp.eq.s32.totalorder %s26, 0
      %p298 = por %p296, %p297
      %p299 = scmp.ne.s32.totalorder %s291, %s293
      %p300 = scmp.eq.s32.totalorder %s31, 1
      %p301 = por %p299, %p300
      %p302 = scmp.ne.s32.totalorder %s293, %s294
      %p303 = scmp.eq.s32.totalorder %s31, 0
      %p304 = por %p302, %p303
      %p305 = scmp.ne.s32.totalorder %s293, %s294
      %p306 = scmp.eq.s32.totalorder %s32, 1
      %p307 = por %p305, %p306
      %p309 = scmp.ne.s32.totalorder %s294, %s308
      %p310 = scmp.eq.s32.totalorder %s32, 0
      %p311 = por %p309, %p310
      %s313 = sadd.s32 %s312, 1
      %p316 = scmp.eq.s32.totalorder %s26, 1
      %p317 = scmp.ne.s32.totalorder %s312, %s314
      %p318 = scmp.eq.s32.totalorder %s26, 0
      %p319 = por %p317, %p318
      %p320 = scmp.ne.s32.totalorder %s312, %s314
      %p321 = scmp.eq.s32.totalorder %s31, 1
      %p322 = por %p320, %p321
      %p323 = scmp.ne.s32.totalorder %s314, %s315
      %p324 = scmp.eq.s32.totalorder %s31, 0
      %p325 = por %p323, %p324
      %p326 = scmp.ne.s32.totalorder %s314, %s315
      %p327 = scmp.eq.s32.totalorder %s32, 1
      %p328 = por %p326, %p327
      %p330 = scmp.ne.s32.totalorder %s315, %s329
      %p331 = scmp.eq.s32.totalorder %s32, 0
      %p332 = por %p330, %p331
      %s334 = sadd.s32 %s333, 1
      %p337 = scmp.eq.s32.totalorder %s26, 1
      %p338 = scmp.ne.s32.totalorder %s333, %s335
      %p339 = scmp.eq.s32.totalorder %s26, 0
      %p340 = por %p338, %p339
      %p341 = scmp.ne.s32.totalorder %s333, %s335
      %p342 = scmp.eq.s32.totalorder %s31, 1
      %p343 = por %p341, %p342
      %p344 = scmp.ne.s32.totalorder %s335, %s336
      %p345 = scmp.eq.s32.totalorder %s31, 0
      %p346 = por %p344, %p345
      %p347 = scmp.ne.s32.totalorder %s335, %s336
      %p348 = scmp.eq.s32.totalorder %s32, 1
      %p349 = por %p347, %p348
      %p351 = scmp.ne.s32.totalorder %s336, %s350
      %p352 = scmp.eq.s32.totalorder %s32, 0
      %p353 = por %p351, %p352
      %s355 = sadd.s32 %s354, 1
      %p358 = scmp.eq.s32.totalorder %s26, 1
      %p359 = scmp.ne.s32.totalorder %s354, %s356
      %p360 = scmp.eq.s32.totalorder %s26, 0
      %p361 = por %p359, %p360
      %p362 = scmp.ne.s32.totalorder %s354, %s356
      %p363 = scmp.eq.s32.totalorder %s31, 1
      %p364 = por %p362, %p363
      %p365 = scmp.ne.s32.totalorder %s356, %s357
      %p366 = scmp.eq.s32.totalorder %s31, 0
      %p367 = por %p365, %p366
      %p368 = scmp.ne.s32.totalorder %s356, %s357
      %p369 = scmp.eq.s32.totalorder %s32, 1
      %p370 = por %p368, %p369
      %p372 = scmp.ne.s32.totalorder %s357, %s371
      %p373 = scmp.eq.s32.totalorder %s32, 0
      %p374 = por %p372, %p373
      %s376 = sadd.s32 %s375, 1
      %p379 = scmp.eq.s32.totalorder %s26, 1
      %p380 = scmp.ne.s32.totalorder %s375, %s377
      %p381 = scmp.eq.s32.totalorder %s26, 0
      %p382 = por %p380, %p381
      %p383 = scmp.ne.s32.totalorder %s375, %s377
      %p384 = scmp.eq.s32.totalorder %s31, 1
      %p385 = por %p383, %p384
      %p386 = scmp.ne.s32.totalorder %s377, %s378
      %p387 = scmp.eq.s32.totalorder %s31, 0
      %p388 = por %p386, %p387
      %p389 = scmp.ne.s32.totalorder %s377, %s378
      %p390 = scmp.eq.s32.totalorder %s32, 1
      %p391 = por %p389, %p390
      %p393 = scmp.ne.s32.totalorder %s378, %s392
      %p394 = scmp.eq.s32.totalorder %s32, 0
      %p395 = por %p393, %p394
      %s396 = ssub.s32 %s26, %s33
      %p397 = scmp.eq.s32.totalorder %s396, 0
      %s399 = sadd.s32 %s398, 1
      %s400 = scalar_select %p397, %s398, %s399
      %p403 = pneg %p397
      %p404 = scmp.eq.s32.totalorder %s26, 1
      %p405 = por %p403, %p404
      %p406 = scmp.ne.s32.totalorder %s398, %s401
      %p407 = scmp.eq.s32.totalorder %s26, 0
      %p408 = por %p406, %p407
      %p409 = scmp.ne.s32.totalorder %s398, %s401
      %p410 = scmp.eq.s32.totalorder %s31, 1
      %p411 = por %p409, %p410
      %p412 = scmp.ne.s32.totalorder %s401, %s402
      %p413 = scmp.eq.s32.totalorder %s31, 0
      %p414 = por %p412, %p413
      %p415 = scmp.ne.s32.totalorder %s401, %s402
      %p416 = scmp.eq.s32.totalorder %s32, 1
      %p417 = por %p415, %p416
      %p419 = scmp.ne.s32.totalorder %s402, %s418
      %p420 = scmp.eq.s32.totalorder %s32, 0
      %p421 = por %p419, %p420
      %p422 = scmp.le.s32.totalorder 1, %s26
      %p423 = scmp.lt.s32.totalorder %s26, 3
      %p424 = pnand %p422, %p423
      %p425 = pneg %p424
      // Predicated region
      $region9: #{tpu_custom_call.1} parent=5 // pred_check
        _
      $region10: #{tpu_custom_call.1} parent=5 // pred_check_branch
        %427 = sbr.rel (%p424) target = $region12
      $region11: #{tpu_custom_call.1} parent=5 // pred_region
        %s428 = ssub.s32 %s26, 1
        // Predicated region
        $region13: #{tpu_custom_call.1} parent=11 // pred_check
          %p429 = pneg %p73
        $region14: #{tpu_custom_call.1} parent=11 // pred_check_branch
          %431 = sbr.rel (%p429) target = $region16
        $region15: #{tpu_custom_call.1} parent=11 // pred_region
          _
        $region16: #{tpu_custom_call.1} parent=11 // pred_fallthru
          _
        // Predicated region
        $region17: #{tpu_custom_call.1} parent=11 // pred_check
          %p432 = pneg %p94
        $region18: #{tpu_custom_call.1} parent=11 // pred_check_branch
          %434 = sbr.rel (%p432) target = $region20
        $region19: #{tpu_custom_call.1} parent=11 // pred_region
          _
        $region20: #{tpu_custom_call.1} parent=11 // pred_fallthru
          _
        // Predicated region
        $region21: #{tpu_custom_call.1} parent=11 // pred_check
          %p435 = pneg %p115
        $region22: #{tpu_custom_call.1} parent=11 // pred_check_branch
          %437 = sbr.rel (%p435) target = $region24
        $region23: #{tpu_custom_call.1} parent=11 // pred_region
          _
        $region24: #{tpu_custom_call.1} parent=11 // pred_fallthru
          _
        // Predicated region
        $region25: #{tpu_custom_call.1} parent=11 // pred_check
          %p438 = pneg %p136
        $region26: #{tpu_custom_call.1} parent=11 // pred_check_branch
          %440 = sbr.rel (%p438) target = $region28
        $region27: #{tpu_custom_call.1} parent=11 // pred_region
          _
        $region28: #{tpu_custom_call.1} parent=11 // pred_fallthru
          _
        // Predicated region
        $region29: #{tpu_custom_call.1} parent=11 // pred_check
          %p441 = pneg %p157
        $region30: #{tpu_custom_call.1} parent=11 // pred_check_branch
          %443 = sbr.rel (%p441) target = $region32
        $region31: #{tpu_custom_call.1} parent=11 // pred_region
          _
        $region32: #{tpu_custom_call.1} parent=11 // pred_fallthru
          _
        // Predicated region
        $region33: #{tpu_custom_call.1} parent=11 // pred_check
          %p444 = pneg %p178
        $region34: #{tpu_custom_call.1} parent=11 // pred_check_branch
          %446 = sbr.rel (%p444) target = $region36
        $region35: #{tpu_custom_call.1} parent=11 // pred_region
          _
        $region36: #{tpu_custom_call.1} parent=11 // pred_fallthru
          _
        // Predicated region
        $region37: #{tpu_custom_call.1} parent=11 // pred_check
          %p447 = pneg %p199
        $region38: #{tpu_custom_call.1} parent=11 // pred_check_branch
          %449 = sbr.rel (%p447) target = $region40
        $region39: #{tpu_custom_call.1} parent=11 // pred_region
          _
        $region40: #{tpu_custom_call.1} parent=11 // pred_fallthru
          _
        // Predicated region
        $region41: #{tpu_custom_call.1} parent=11 // pred_check
          %p450 = pneg %p220
        $region42: #{tpu_custom_call.1} parent=11 // pred_check_branch
          %452 = sbr.rel (%p450) target = $region44
        $region43: #{tpu_custom_call.1} parent=11 // pred_region
          _
        $region44: #{tpu_custom_call.1} parent=11 // pred_fallthru
          _
        // Predicated region
        $region45: #{tpu_custom_call.1} parent=11 // pred_check
          %p453 = pneg %p241
        $region46: #{tpu_custom_call.1} parent=11 // pred_check_branch
          %455 = sbr.rel (%p453) target = $region48
        $region47: #{tpu_custom_call.1} parent=11 // pred_region
          _
        $region48: #{tpu_custom_call.1} parent=11 // pred_fallthru
          _
        // Predicated region
        $region49: #{tpu_custom_call.1} parent=11 // pred_check
          %p456 = pneg %p262
        $region50: #{tpu_custom_call.1} parent=11 // pred_check_branch
          %458 = sbr.rel (%p456) target = $region52
        $region51: #{tpu_custom_call.1} parent=11 // pred_region
          _
        $region52: #{tpu_custom_call.1} parent=11 // pred_fallthru
          _
        // Predicated region
        $region53: #{tpu_custom_call.1} parent=11 // pred_check
          %p459 = pneg %p283
        $region54: #{tpu_custom_call.1} parent=11 // pred_check_branch
          %461 = sbr.rel (%p459) target = $region56
        $region55: #{tpu_custom_call.1} parent=11 // pred_region
          _
        $region56: #{tpu_custom_call.1} parent=11 // pred_fallthru
          _
        // Predicated region
        $region57: #{tpu_custom_call.1} parent=11 // pred_check
          %p462 = pneg %p304
        $region58: #{tpu_custom_call.1} parent=11 // pred_check_branch
          %464 = sbr.rel (%p462) target = $region60
        $region59: #{tpu_custom_call.1} parent=11 // pred_region
          _
        $region60: #{tpu_custom_call.1} parent=11 // pred_fallthru
          _
        // Predicated region
        $region61: #{tpu_custom_call.1} parent=11 // pred_check
          %p465 = pneg %p325
        $region62: #{tpu_custom_call.1} parent=11 // pred_check_branch
          %467 = sbr.rel (%p465) target = $region64
        $region63: #{tpu_custom_call.1} parent=11 // pred_region
          _
        $region64: #{tpu_custom_call.1} parent=11 // pred_fallthru
          _
        // Predicated region
        $region65: #{tpu_custom_call.1} parent=11 // pred_check
          %p468 = pneg %p346
        $region66: #{tpu_custom_call.1} parent=11 // pred_check_branch
          %470 = sbr.rel (%p468) target = $region68
        $region67: #{tpu_custom_call.1} parent=11 // pred_region
          _
        $region68: #{tpu_custom_call.1} parent=11 // pred_fallthru
          _
        // Predicated region
        $region69: #{tpu_custom_call.1} parent=11 // pred_check
          %p471 = pneg %p367
        $region70: #{tpu_custom_call.1} parent=11 // pred_check_branch
          %473 = sbr.rel (%p471) target = $region72
        $region71: #{tpu_custom_call.1} parent=11 // pred_region
          _
        $region72: #{tpu_custom_call.1} parent=11 // pred_fallthru
          _
        // Predicated region
        $region73: #{tpu_custom_call.1} parent=11 // pred_check
          %p474 = pneg %p388
        $region74: #{tpu_custom_call.1} parent=11 // pred_check_branch
          %476 = sbr.rel (%p474) target = $region76
        $region75: #{tpu_custom_call.1} parent=11 // pred_region
          _
        $region76: #{tpu_custom_call.1} parent=11 // pred_fallthru
          _
      $region12: #{tpu_custom_call.1} parent=5 // pred_fallthru
        _
      %p477 = scmp.lt.s32.totalorder %s26, 2
      // Predicated region
      $region77: #{tpu_custom_call.1} parent=5 // pred_check
        %p478 = pneg %p477
      $region78: #{tpu_custom_call.1} parent=5 // pred_check_branch
        %480 = sbr.rel (%p478) target = $region80
      $region79: #{tpu_custom_call.1} parent=5 // pred_region
        // Predicated region
        $region81: #{tpu_custom_call.1} parent=79 // pred_check
          %p481 = pneg %p46
        $region82: #{tpu_custom_call.1} parent=79 // pred_check_branch
          %483 = sbr.rel (%p481) target = $region84
        $region83: #{tpu_custom_call.1} parent=79 // pred_region
          %p484 = scmp.lt.s32.totalorder %s26, 1
          %s485 = scalar_select %p484, %s26, 1
          %s486 = smul.addr %s485, 8
          %s487 = scalar_lea.vmem %s0, %s486
        $region84: #{tpu_custom_call.1} parent=79 // pred_fallthru
          _
      $region80: #{tpu_custom_call.1} parent=5 // pred_fallthru
        _
      %p488 = scmp.le.s32.totalorder 1, %s26
      %p489 = scmp.lt.s32.totalorder %s26, 3
      %p490 = pnand %p488, %p489
      %p491 = pneg %p490
      // Predicated region
      $region85: #{tpu_custom_call.1} parent=5 // pred_check
        _
      $region86: #{tpu_custom_call.1} parent=5 // pred_check_branch
        %493 = sbr.rel (%p490) target = $region88
      $region87: #{tpu_custom_call.1} parent=5 // pred_region
        %s494 = ssub.s32 %s26, 1
        %p495 = scmp.lt.s32.totalorder %s31, 1
        %s496 = scalar_select %p495, %s31, 1
        %s497 = smul.addr %s496, 8
        %s498 = scalar_lea.vmem %s0, %s497
        %p499 = pneg %p52
        %p500 = pneg %p49
        %p501 = pneg %p73
        %p502 = pneg %p70
        %p503 = pneg %p94
        %p504 = pneg %p91
        %p505 = pneg %p115
        %p506 = pneg %p112
        %p507 = pneg %p136
        %p508 = pneg %p133
        %p509 = pneg %p157
        %p510 = pneg %p154
        %p511 = pneg %p178
        %p512 = pneg %p175
        %p513 = pneg %p199
        %p514 = pneg %p196
        %p515 = pneg %p220
        %p516 = pneg %p217
        %p517 = pneg %p241
        %p518 = pneg %p238
        %p519 = pneg %p262
        %p520 = pneg %p259
        %p521 = pneg %p283
        %p522 = pneg %p280
        %p523 = pneg %p304
        %p524 = pneg %p301
        %p525 = pneg %p325
        %p526 = pneg %p322
        %p527 = pneg %p346
        %p528 = pneg %p343
        %p529 = pneg %p367
        %p530 = pneg %p364
        %p531 = pneg %p388
        %p532 = pneg %p385
        %p533 = pneg %p414
        %p534 = pneg %p411
        %s535 = sand.u32 %s401, 1
        %s536 = scalar_lea.sflag [#allocation3], %s535
        %s537 = sand.u32 %s401, 1
        %s538 = smul.addr %s537, 4
        %s539 = scalar_lea.vmem [#allocation2], %s538
        %p540 = scmp.lt.s32.totalorder %s31, 1
        %s541 = scalar_select %p540, %s31, 1
        %s542 = smul.addr %s541, 8
        %s543 = scalar_lea.vmem %s0, %s542
        %v545 = vld [vmem:[%s543] sm:$0xff]
        %v546 = vpack.c.bf16 %v545, %v545
        %v547 = vld [vmem:[%s8] sm:$0x1]
        %v549 = vperm.slane %v547, 0
        loop: start=0, step=1, limit=4
        $region89: #{tpu_custom_call.1} parent=87 // loop_pre_header
          _
        $region90: #{tpu_custom_call.1} parent=87 // loop_header
          %s552 = sphi 0, %s556
          %p553 = scmp.ge.s32.totalorder %s552, 4
          %v557 = vphi %v549, %v749
        $region91: #{tpu_custom_call.1} parent=87 // loop_header_branch
          %555 = sbr.rel (%p553) target = $region95
        $region92: #{tpu_custom_call.1} parent=87 // loop_body
          %s558 = smul.u32 %s552, 4
          %s559 = smul.addr %s558, 4
          %s560 = scalar_lea.vmem %s1, %s559
          %v561 = vld [vmem:[%s560] sm:$0xf]
          %v562 = vld [vmem:[%s560 + $0x4] sm:$0xf]
          %v563 = vld [vmem:[%s560 + $0x8] sm:$0xf]
          %v564 = vld [vmem:[%s560 + $0xc] sm:$0xf]
          %s565 = scalar_lea.vmem %s2, %s552
          %v566 = vld [vmem:[%s565] sm:$0x1]
          %v568 = vperm.slane %v566, 0
          %v574 = vunpack.c.l.b16 %v561
          %v575 = vunpack.c.l.b16 %v562
          %v576 = vunpack.c.l.b16 %v563
          %v577 = vunpack.c.l.b16 %v564
          %v578 = vpack.c.b16 %v575, %v574
          %v579 = vpack.c.b16 %v577, %v576
          %vm582 = vcmask 261120
          %v584 = vsel %vm582, %v546, 0
          %586 = vmatpush.bf16.msra.mxu0 0
          %587 = vmatpush.bf16.msra.mxu0 0
          %588 = vmatpush.bf16.msra.mxu0 0
          %589 = vmatpush.bf16.msra.mxu0 0
          %590 = vmatpush.bf16.msra.mxu0 0
          %591 = vmatpush.bf16.msra.mxu0 0
          %592 = vmatpush.bf16.msra.mxu0 %v579
          %593 = vmatpush.bf16.msra.mxu0 %v578
          %594 = vmatmul.bf16.gmra.mxu0 %v584
          %v595 = vpop.f32.mrf.mxu0
          %v596 = vadd.f32 %v568, %v595
          %v597 = vpop.f32.mrf.mxu0
          %598 = vdwg.mxu0
          %v599 = vpack.c.bf16 %v596, %v596
          %s600 = smul.addr %s558, 4
          %s601 = scalar_lea.vmem %s3, %s600
          %v602 = vld [vmem:[%s601] sm:$0xf]
          %v603 = vld [vmem:[%s601 + $0x4] sm:$0xf]
          %v604 = vld [vmem:[%s601 + $0x8] sm:$0xf]
          %v605 = vld [vmem:[%s601 + $0xc] sm:$0xf]
          %s606 = scalar_lea.vmem %s4, %s552
          %v607 = vld [vmem:[%s606] sm:$0x1]
          %v609 = vperm.slane %v607, 0
          %v615 = vunpack.c.l.b16 %v602
          %v616 = vunpack.c.l.b16 %v603
          %v617 = vunpack.c.l.b16 %v604
          %v618 = vunpack.c.l.b16 %v605
          %v619 = vpack.c.b16 %v616, %v615
          %v620 = vpack.c.b16 %v618, %v617
          %623 = vmatpush.bf16.msra.mxu0 0
          %624 = vmatpush.bf16.msra.mxu0 0
          %625 = vmatpush.bf16.msra.mxu0 0
          %626 = vmatpush.bf16.msra.mxu0 0
          %627 = vmatpush.bf16.msra.mxu0 0
          %628 = vmatpush.bf16.msra.mxu0 0
          %629 = vmatpush.bf16.msra.mxu0 %v620
          %630 = vmatpush.bf16.msra.mxu0 %v619
          %631 = vmatmul.bf16.gmra.mxu0 %v584
          %v632 = vpop.f32.mrf.mxu0
          %v633 = vadd.f32 %v609, %v632
          %v634 = vpop.f32.mrf.mxu0
          %635 = vdwg.mxu0
          %v636 = vpack.c.bf16 %v633, %v633
          %s637 = smul.addr %s558, 4
          %s638 = scalar_lea.vmem %s5, %s637
          %v639 = vld [vmem:[%s638] sm:$0xf]
          %v640 = vld [vmem:[%s638 + $0x4] sm:$0xf]
          %v641 = vld [vmem:[%s638 + $0x8] sm:$0xf]
          %v642 = vld [vmem:[%s638 + $0xc] sm:$0xf]
          %s643 = scalar_lea.vmem %s6, %s552
          %v644 = vld [vmem:[%s643] sm:$0x1]
          %v646 = vperm.slane %v644, 0
          %v652 = vunpack.c.l.b16 %v639
          %v653 = vunpack.c.l.b16 %v640
          %v654 = vunpack.c.l.b16 %v641
          %v655 = vunpack.c.l.b16 %v642
          %v656 = vpack.c.b16 %v653, %v652
          %v657 = vpack.c.b16 %v655, %v654
          %660 = vmatpush.bf16.msra.mxu0 0
          %661 = vmatpush.bf16.msra.mxu0 0
          %662 = vmatpush.bf16.msra.mxu0 0
          %663 = vmatpush.bf16.msra.mxu0 0
          %664 = vmatpush.bf16.msra.mxu0 0
          %665 = vmatpush.bf16.msra.mxu0 0
          %666 = vmatpush.bf16.msra.mxu0 %v657
          %667 = vmatpush.bf16.msra.mxu0 %v656
          %668 = vmatmul.bf16.gmra.mxu0 %v584
          %v669 = vpop.f32.mrf.mxu0
          %v670 = vadd.f32 %v646, %v669
          %v671 = vpop.f32.mrf.mxu0
          %672 = vdwg.mxu0
          %v673 = vpack.c.bf16 %v670, %v670
          %vm674 = vcmask 64512
          %v676 = vsel %vm674, %v599, 0
          %v679 = vsel %vm674, %v636, 0
          %681 = vmatpush.bf16.xpose.msra.mxu0 0
          %682 = vmatpush.bf16.xpose.msra.mxu0 0
          %683 = vmatpush.bf16.xpose.msra.mxu0 0
          %684 = vmatpush.bf16.xpose.msra.mxu0 0
          %685 = vmatpush.bf16.xpose.msra.mxu0 0
          %686 = vmatpush.bf16.xpose.msra.mxu0 0
          %687 = vmatpush.bf16.xpose.msra.mxu0 0
          %688 = vmatpush.bf16.xpose.msra.mxu0 %v679
          %689 = vmatmul.bf16.gmra.mxu0 %v676
          %v690 = vpop.f32.mrf.mxu0
          %v691 = vadd.f32 0.0, %v690
          %v692 = vpop.f32.mrf.mxu0
          %693 = vdwg.mxu0
          %v694 = vsel %vm674, %v691, -inf
          %695 = vmax.xlane.f32.xlu0 %v694
          %v696 = vpop.xlane.xlu0 %695
          %v697 = vsub.f32 %v691, %v696
          %v698 = vmul.f32 %v697, 1.442695
          %v699 = vpow.pop %v698
          %v700 = vsel %vm674, %v699, 0.0
          %701 = vadd.xlane.f32.xlu0 %v700
          %v702 = vpop.xlane.xlu0 %701
          %v703 = vrcp.pop %v702
          %v704 = vmul.f32 %v699, %v703
          %v705 = vpack.c.bf16 %v704, %v704
          %v707 = vsel %vm674, %v705, 0
          %vm709 = vcmask 1043456
          %v711 = vsel %vm709, %v673, 0
          %713 = vmatpush.bf16.msra.mxu0 0
          %714 = vmatpush.bf16.msra.mxu0 0
          %715 = vmatpush.bf16.msra.mxu0 0
          %716 = vmatpush.bf16.msra.mxu0 0
          %717 = vmatpush.bf16.msra.mxu0 0
          %718 = vmatpush.bf16.msra.mxu0 0
          %719 = vmatpush.bf16.msra.mxu0 0
          %720 = vmatpush.bf16.msra.mxu0 %v711
          %721 = vmatmul.bf16.gmra.mxu0 %v707
          %v722 = vpop.f32.mrf.mxu0
          %v723 = vadd.f32 0.0, %v722
          %v724 = vpop.f32.mrf.mxu0
          %725 = vdwg.mxu0
          %v726 = vpack.c.bf16 %v723, %v723
          %s727 = smul.addr %s552, 4
          %s728 = scalar_lea.vmem %s7, %s727
          %v729 = vld [vmem:[%s728] sm:$0xf]
          %v731 = vsel %vm674, %v726, 0
          %v734 = vsel %vm709, %v729, 0
          %736 = vmatpush.bf16.msra.mxu0 0
          %737 = vmatpush.bf16.msra.mxu0 0
          %738 = vmatpush.bf16.msra.mxu0 0
          %739 = vmatpush.bf16.msra.mxu0 0
          %740 = vmatpush.bf16.msra.mxu0 0
          %741 = vmatpush.bf16.msra.mxu0 0
          %742 = vmatpush.bf16.msra.mxu0 0
          %743 = vmatpush.bf16.msra.mxu0 %v734
          %744 = vmatmul.bf16.gmra.mxu0 %v731
          %v745 = vpop.f32.mrf.mxu0
          %v746 = vadd.f32 0.0, %v745
          %v747 = vpop.f32.mrf.mxu0
          %748 = vdwg.mxu0
          %v749 = vadd.f32 %v557, %v746
        $region93: #{tpu_custom_call.1} parent=87 // loop_footer
          %s556 = sadd.s32 1, %s552
        $region94: #{tpu_custom_call.1} parent=87 // loop_footer_branch
          %551 = sbr.rel target = $region90
        $region95: #{tpu_custom_call.1} parent=87 // loop_exit
          _
        %v750 = vadd.f32 %v545, %v557
        %vm751 = vcmask 261120
        %v752 = vsel %vm751, %v750, 0.0
        %753 = vadd.xlane.f32.xlu0 %v752
        %v754 = vpop.xlane.xlu0 %753
        %v755 = vrcp.pop 32.0
        %v756 = vmul.f32 32.0, %v755
        %v757 = vsub.f32 1.0, %v756
        %v758 = vmul.f32 %v755, %v757
        %v759 = vadd.f32 %v755, %v758
        %vm760 = vweird.f32 %v755
        %v761 = vsel %vm760, %v755, %v759
        %v762 = vmul.f32 %v754, %v761
        %v763 = vsub.f32 %v750, %v762
        %v764 = vmul.f32 %v763, %v763
        %v765 = vsel %vm751, %v764, 0.0
        %766 = vadd.xlane.f32.xlu0 %v765
        %v767 = vpop.xlane.xlu0 %766
        %v768 = vmul.f32 %v767, %v761
        %v769 = vadd.f32 %v768, 1e-05
        %v770 = vrsqrt.pop %v769
        %v771 = vmul.f32 %v770, %v769
        %v772 = vmul.f32 %v771, %v770
        %v773 = vmul.f32 0.5, %v772
        %v774 = vsub.f32 1.5, %v773
        %v775 = vmul.f32 %v770, %v774
        %vm776 = vweird.f32 %v769
        %vm777 = vweird.f32 %v770
        %vm778 = vmor %vm776, %vm777
        %v779 = vsel %vm778, %v770, %v775
        %v780 = vmul.f32 %v763, %v779
        %v781 = vld [vmem:[%s9] sm:$0x1]
        %v783 = vperm.slane %v781, 0
        %v785 = vmul.f32 %v780, %v783
        %v786 = vld [vmem:[%s10] sm:$0x1]
        %v788 = vperm.slane %v786, 0
        %v790 = vadd.f32 %v785, %v788
        %v791 = vpack.c.bf16 %v790, %v790
        %v792 = vld [vmem:[%s11] sm:$0xf]
        %v793 = vld [vmem:[%s11 + $0x4] sm:$0xf]
        %v794 = vld [vmem:[%s11 + $0x8] sm:$0xf]
        %v795 = vld [vmem:[%s11 + $0xc] sm:$0xf]
        %v796 = vld [vmem:[%s12] sm:$0x1]
        %v798 = vperm.slane %v796, 0
        %v804 = vunpack.c.l.b16 %v792
        %v805 = vunpack.c.l.b16 %v793
        %v806 = vunpack.c.l.b16 %v794
        %v807 = vunpack.c.l.b16 %v795
        %v808 = vpack.c.b16 %v805, %v804
        %v809 = vpack.c.b16 %v807, %v806
        %v813 = vsel %vm751, %v791, 0
        %815 = vmatpush.bf16.msra.mxu0 0
        %816 = vmatpush.bf16.msra.mxu0 0
        %817 = vmatpush.bf16.msra.mxu0 0
        %818 = vmatpush.bf16.msra.mxu0 0
        %819 = vmatpush.bf16.msra.mxu0 0
        %820 = vmatpush.bf16.msra.mxu0 0
        %821 = vmatpush.bf16.msra.mxu0 %v809
        %822 = vmatpush.bf16.msra.mxu0 %v808
        %823 = vmatmul.bf16.gmra.mxu0 %v813
        %v824 = vpop.f32.mrf.mxu0
        %v825 = vadd.f32 %v798, %v824
        %v826 = vpop.f32.mrf.mxu0
        %827 = vdwg.mxu0
        %v828 = vmax.f32 %v825, 0.0
        %v829 = vpack.c.bf16 %v828, %v828
        %v830 = vld [vmem:[%s13] sm:$0xf]
        %v831 = vld [vmem:[%s13 + $0x4] sm:$0xf]
        %v832 = vld [vmem:[%s13 + $0x8] sm:$0xf]
        %v833 = vld [vmem:[%s13 + $0xc] sm:$0xf]
        %v834 = vld [vmem:[%s13 + $0x10] sm:$0xf]
        %v835 = vld [vmem:[%s13 + $0x14] sm:$0xf]
        %v836 = vld [vmem:[%s13 + $0x18] sm:$0xf]
        %v837 = vld [vmem:[%s13 + $0x1c] sm:$0xf]
        %v838 = vld [vmem:[%s14] sm:$0x1]
        %v840 = vperm.slane %v838, 0
        %v850 = vunpack.c.l.b16 %v830
        %v851 = vunpack.c.l.b16 %v831
        %v852 = vunpack.c.l.b16 %v832
        %v853 = vunpack.c.l.b16 %v833
        %v854 = vunpack.c.l.b16 %v834
        %v855 = vunpack.c.l.b16 %v835
        %v856 = vunpack.c.l.b16 %v836
        %v857 = vunpack.c.l.b16 %v837
        %v858 = vpack.c.b16 %v851, %v850
        %v859 = vpack.c.b16 %v853, %v852
        %v860 = vpack.c.b16 %v855, %v854
        %v861 = vpack.c.b16 %v857, %v856
        %vm866 = vcmask 523264
        %v868 = vsel %vm866, %v829, 0
        %870 = vmatpush.bf16.msra.mxu0 0
        %871 = vmatpush.bf16.msra.mxu0 0
        %872 = vmatpush.bf16.msra.mxu0 0
        %873 = vmatpush.bf16.msra.mxu0 0
        %874 = vmatpush.bf16.msra.mxu0 %v861
        %875 = vmatpush.bf16.msra.mxu0 %v860
        %876 = vmatpush.bf16.msra.mxu0 %v859
        %877 = vmatpush.bf16.msra.mxu0 %v858
        %878 = vmatmul.bf16.gmra.mxu0 %v868
        %v879 = vpop.f32.mrf.mxu0
        %v880 = vadd.f32 %v840, %v879
        %v881 = vpop.f32.mrf.mxu0
        %882 = vdwg.mxu0
        %v883 = vadd.f32 %v790, %v880
        %v884 = vsel %vm751, %v883, 0.0
        %885 = vadd.xlane.f32.xlu0 %v884
        %v886 = vpop.xlane.xlu0 %885
        %v887 = vmul.f32 %v886, %v761
        %v888 = vsub.f32 %v883, %v887
        %v889 = vmul.f32 %v888, %v888
        %v890 = vsel %vm751, %v889, 0.0
        %891 = vadd.xlane.f32.xlu0 %v890
        %v892 = vpop.xlane.xlu0 %891
        %v893 = vmul.f32 %v892, %v761
        %v894 = vadd.f32 %v893, 1e-05
        %v895 = vrsqrt.pop %v894
        %v896 = vmul.f32 %v895, %v894
        %v897 = vmul.f32 %v896, %v895
        %v898 = vmul.f32 0.5, %v897
        %v899 = vsub.f32 1.5, %v898
        %v900 = vmul.f32 %v895, %v899
        %vm901 = vweird.f32 %v894
        %vm902 = vweird.f32 %v895
        %vm903 = vmor %vm901, %vm902
        %v904 = vsel %vm903, %v895, %v900
        %v905 = vmul.f32 %v888, %v904
        %v906 = vld [vmem:[%s15] sm:$0x1]
        %v908 = vperm.slane %v906, 0
        %v910 = vmul.f32 %v905, %v908
        %v911 = vld [vmem:[%s16] sm:$0x1]
        %v913 = vperm.slane %v911, 0
        %v915 = vadd.f32 %v910, %v913
        %v916 = vpack.c.bf16 %v915, %v915
        %vm917 = vcmask 257024
        %918 = vst.msk [vmem:[%s539] sm:$0xf] %vm917, %v916
        %s919 = sand.u32 %s401, 1
        %s920 = scalar_lea.sflag [#allocation3], %s919
        %s921 = sand.u32 %s401, 1
        %s922 = smul.addr %s921, 4
        %s923 = scalar_lea.vmem [#allocation2], %s922
        // Predicated region
        $region96: #{tpu_custom_call.1} parent=87 // pred_check
          %p924 = pneg %p411
        $region97: #{tpu_custom_call.1} parent=87 // pred_check_branch
          %926 = sbr.rel (%p924) target = $region99
        $region98: #{tpu_custom_call.1} parent=87 // pred_region
          %928 = vsyncadd %s920, 0
          %s929 = smul.addr %s31, 4
          %s930 = scalar_lea.hbm %s17, %s929
          %s932 = sshll.u32 %s923, 4
          %s933 = int_to_ptr.vmem [resolvable:$true] %s932
          %s934 = sshll.u32 %s930, 4
          %s935 = int_to_ptr.hbm [resolvable:$true] %s934
          %937 = dma.vmem_to_hbm [thread:$0]  %s933, 64, %s935, %s920
        $region99: #{tpu_custom_call.1} parent=87 // pred_fallthru
          _
      $region88: #{tpu_custom_call.1} parent=5 // pred_fallthru
        _
      %p938 = scmp.le.s32.totalorder 2, %s26
      // Predicated region
      $region100: #{tpu_custom_call.1} parent=5 // pred_check
        %p939 = pneg %p938
      $region101: #{tpu_custom_call.1} parent=5 // pred_check_branch
        %941 = sbr.rel (%p939) target = $region103
      $region102: #{tpu_custom_call.1} parent=5 // pred_region
        %s942 = ssub.s32 %s26, 2
        // Predicated region
        $region104: #{tpu_custom_call.1} parent=102 // pred_check
          %p943 = pneg %p417
        $region105: #{tpu_custom_call.1} parent=102 // pred_check_branch
          %945 = sbr.rel (%p943) target = $region107
        $region106: #{tpu_custom_call.1} parent=102 // pred_region
          %s946 = sand.u32 %s402, 1
          %s947 = scalar_lea.sflag [#allocation3], %s946
          %s948 = sand.u32 %s402, 1
          %s949 = smul.addr %s948, 4
          %s950 = scalar_lea.vmem [#allocation2], %s949
          %952 = dma.done %s947, 64
        $region107: #{tpu_custom_call.1} parent=102 // pred_fallthru
          _
      $region103: #{tpu_custom_call.1} parent=5 // pred_fallthru
        _
    $region6: #{tpu_custom_call.1} parent=1 // loop_footer
      %s30 = sadd.s32 1, %s26
    $region7: #{tpu_custom_call.1} parent=1 // loop_footer_branch
      %25 = sbr.rel target = $region3
    $region8: #{tpu_custom_call.1} parent=1 // loop_exit
      _
    %953 = vsyncpa [#allocation3], 1
    %s954 = scalar_lea.sflag [#allocation3], 1
    %955 = vsyncpa %s954, 1

</llo_original>
